<compile_context>
chip_gen: v5e
topology: v5e:2x2
jax: 0.10.0
libtpu: 0.0.40
codegen_flags: <defaults>
</compile_context>

<pallas_src>
import math

import jax
import jax.numpy as jnp
import numpy as np
from jax.experimental import pallas as pl
from jax.experimental.pallas import tpu as pltpu


def _vmem_budget():
    """(tile_budget_bytes, vmem_limit_bytes), generation-aware.

    v5e / v6e have 128 MiB physical VMEM -> allow ~24 MiB of per-step buffers
    and raise the scoped limit to 96 MiB.  v7x (or unknown) has 64 MiB -> keep
    the conservative 12 / 48 MiB settings.
    """
    try:
        info = pltpu.get_tpu_info()
        vmem = int(getattr(info, "vmem_capacity_bytes", 64 * 1024 * 1024))
    except Exception:  # interpret mode / query unavailable -> be conservative
        vmem = 64 * 1024 * 1024
    if vmem >= 96 * 1024 * 1024:
        return 24 * 1024 * 1024, 96 * 1024 * 1024
    return 12 * 1024 * 1024, 48 * 1024 * 1024


def _pick_row_tile(H, W, C, tile_budget_bytes):
    """Largest divisor of H whose per-step VMEM footprint fits the budget."""
    # Fixed cost: double-buffered bf16 (9C, C) weights + bias.
    fixed = 2 * 9 * C * C * 2 + 4 * C + 1024
    # Per output row (bf16 unless noted):
    #   x1/x2 center blocks double-buffered   : 2 * 2 * W*C*2
    #   output block double-buffered          : 2 * W*C*2
    #   z / z_left / z_right / zcat temporaries: ~ 8 * W*C*2
    #   (TH*W, 9C) im2col patch               : 9 * W*C*2
    #   f32 matmul result before the store    : W*C*4
    per_row = (8 + 4 + 16 + 18 + 4) * W * C
    cap = max(1, (tile_budget_bytes - fixed) // per_row)
    divisors = [d for d in range(1, H + 1) if H % d == 0 and d <= cap]
    # TODO(synk): for awkward H (e.g. prime) this degrades to TH=1; a cdiv grid
    # with a masked last tile would be more general.
    return max(divisors) if divisors else 1


# ---------------------------------------------------------------------------
# Pallas kernel: fused (x1 + x2) -> ReLU -> 3x3 "same" conv + bias, row-tiled
# ---------------------------------------------------------------------------
def _merge_conv_kernel(x1c_ref, x1t_ref, x1b_ref, x2c_ref, x2t_ref, x2b_ref,
                       w_ref, b_ref, o_ref):
    # x*c_ref: (1, TH, W, C) bf16  center rows of this tile
    # x*t_ref: (1, 1,  W, C) bf16  row above the tile (clamped at the top border)
    # x*b_ref: (1, 1,  W, C) bf16  row below the tile (clamped at the bottom border)
    # w_ref:   (9C, C) bf16        weights flattened as (kh*3C + kw*C + cin, cout)
    # b_ref:   (1, C)  f32         bias
    # o_ref:   (1, TH, W, C) bf16
    _, TH, W, C = o_ref.shape
    rt = pl.program_id(1)
    last = pl.num_programs(1) - 1

    # Binary op (sum) + ReLU in bf16 on the VPU (Mosaic extends to f32
    # internally on chips without native bf16 VALU, e.g. v5e).
    zc = jnp.maximum(x1c_ref[0] + x2c_ref[0], 0.0)          # (TH, W, C)
    zt = jnp.maximum(x1t_ref[0] + x2t_ref[0], 0.0)          # (1,  W, C)
    zb = jnp.maximum(x1b_ref[0] + x2b_ref[0], 0.0)          # (1,  W, C)
    # In-kernel zero halo at the image top/bottom (== conv zero padding).
    zt = jnp.where(rt == 0, jnp.zeros_like(zt), zt)
    zb = jnp.where(rt == last, jnp.zeros_like(zb), zb)
    z = jnp.concatenate([zt, zc, zb], axis=0)                # (TH+2, W, C)

    # Column halo ("same" padding along W) + im2col over the kernel-width taps:
    # zcat[r, j, kw*C + c] == z_padded[r, j-1+kw, c]
    # (plain shifted concatenates; a pltpu.roll + edge-mask variant would move
    #  this onto the XLU slot, minor win on v5e only).
    zero_col = jnp.zeros((TH + 2, 1, C), z.dtype)
    z_left = jnp.concatenate([zero_col, z[:, :W - 1, :]], axis=1)   # col j-1
    z_right = jnp.concatenate([z[:, 1:, :], zero_col], axis=1)      # col j+1
    zcat = jnp.concatenate([z_left, z, z_right], axis=-1)           # (TH+2, W, 3C)

    # im2col over the kernel-height taps -> ONE MXU matmul, K = 9C, f32 acc.
    # patch[r, j, kh*3C + kw*C + c] == z_padded[r-1+kh, j-1+kw, c]
    patch = jnp.concatenate(
        [zcat[0:TH], zcat[1:TH + 1], zcat[2:TH + 2]], axis=-1       # (TH, W, 9C)
    ).reshape(TH * W, 9 * C)
    y = jnp.dot(patch, w_ref[...], preferred_element_type=jnp.float32)
    y = y + b_ref[0]                                                # bias epilogue
    o_ref[0] = y.reshape(TH, W, C).astype(o_ref.dtype)


def _merge_conv_pallas(x1_nhwc, x2_nhwc, w9_bf16, bias, row_tile=None):
    """x1_nhwc, x2_nhwc: (N, H, W, C) bf16, already resized to out_size."""
    N, H, W, C = x1_nhwc.shape
    tile_budget, vmem_limit = _vmem_budget()
    TH = _pick_row_tile(H, W, C, tile_budget) if row_tile is None else int(row_tile)
    if H % TH != 0:
        raise ValueError(f"row_tile {TH} must divide H={H}")
    RT = H // TH
    b2 = bias.reshape(1, C).astype(jnp.float32)

    # Overlapping 1-row halos are expressed as extra 1-row BlockSpecs with
    # border-clamped index maps (masked to zero inside the kernel), so the
    # whole thing stays on the automatic double-buffered pipeline.
    center = pl.BlockSpec((1, TH, W, C), lambda n, rt: (n, rt, 0, 0))
    top = pl.BlockSpec((1, 1, W, C),
                       lambda n, rt: (n, jnp.maximum(rt * TH - 1, 0), 0, 0))
    bot = pl.BlockSpec((1, 1, W, C),
                       lambda n, rt: (n, jnp.minimum(rt * TH + TH, H - 1), 0, 0))
    w_spec = pl.BlockSpec((9 * C, C), lambda n, rt: (0, 0))
    b_spec = pl.BlockSpec((1, C), lambda n, rt: (0, 0))

    return pl.pallas_call(
        _merge_conv_kernel,
        out_shape=jax.ShapeDtypeStruct((N, H, W, C), jnp.bfloat16),
        grid_spec=pltpu.PrefetchScalarGridSpec(
            num_scalar_prefetch=0,
            grid=(N, RT),
            in_specs=[center, top, bot, center, top, bot, w_spec, b_spec],
            out_specs=pl.BlockSpec((1, TH, W, C), lambda n, rt: (n, rt, 0, 0)),
        ),
        compiler_params=pltpu.CompilerParams(
            dimension_semantics=("parallel", "parallel"),
            vmem_limit_bytes=vmem_limit),
    )(x1_nhwc, x1_nhwc, x1_nhwc, x2_nhwc, x2_nhwc, x2_nhwc, w9_bf16, b2)


# ---------------------------------------------------------------------------
# Glue: PyTorch-equivalent resize (fused with layout/dtype), params, wrapper
# ---------------------------------------------------------------------------
def _resize_to_nhwc_bf16(x_nchw, size):
    """MergingCell._resize semantics, emitted directly as NHWC bf16.

    The transpose / cast is applied on the *small* side of each resize so the
    full-size intermediate is only ever materialized once, in bf16.
    """
    h_out, w_out = int(size[0]), int(size[1])
    n, c, h, w = x_nchw.shape
    if (h, w) == (h_out, w_out):
        return jnp.transpose(x_nchw, (0, 2, 3, 1)).astype(jnp.bfloat16)
    elif (h, w) < (h_out, w_out):  # lexicographic, faithful to the PyTorch code
        # nearest: src = floor(dst * in / out) along both dims (F.interpolate)
        hi = (np.arange(h_out) * h) // h_out
        wi = (np.arange(w_out) * w) // w_out
        xs = jnp.transpose(x_nchw, (0, 2, 3, 1)).astype(jnp.bfloat16)
        return xs[:, hi][:, :, wi]
    else:
        assert h % h_out == 0 and w % w_out == 0
        kh = math.ceil(h / h_out)
        kw = math.ceil(w / w_out)
        # max is monotone, so pooling in bf16 equals pooling in f32 then casting
        xp = x_nchw.astype(jnp.bfloat16).reshape(n, c, h_out, kh, w_out, kw)
        xp = jnp.max(xp, axis=(3, 5))
        return jnp.transpose(xp, (0, 2, 3, 1))


def _resize_nchw_f32(x, size):
    """Plain f32 NCHW resize (used only for the with_conv=False path)."""
    h_out, w_out = int(size[0]), int(size[1])
    n, c, h, w = x.shape
    if (h, w) == (h_out, w_out):
        return x
    elif (h, w) < (h_out, w_out):
        hi = (np.arange(h_out) * h) // h_out
        wi = (np.arange(w_out) * w) // w_out
        return x[:, :, hi, :][:, :, :, wi]
    else:
        assert h % h_out == 0 and w % w_out == 0
        kh = math.ceil(h / h_out)
        kw = math.ceil(w / w_out)
        return jnp.max(x.reshape(n, c, h_out, kh, w_out, kw), axis=(3, 5))


class MergingCellPallas:
    def __init__(self, dim_in=256, with_conv=True, key=None):
        self.dim_in = dim_in
        self.with_conv = with_conv
        if key is None:
            key = jax.random.PRNGKey(0)
        if self.with_conv:
            kw, kb = jax.random.split(key)
            bound = 1.0 / math.sqrt(dim_in * 9)
            w_oihw = jax.random.uniform(
                kw, (dim_in, dim_in, 3, 3), jnp.float32, -bound, bound)
            self.bias = jax.random.uniform(
                kb, (dim_in,), jnp.float32, -bound, bound)
            # OIHW -> HWIO -> (kh*kw*cin, cout), cast once to bf16 for the MXU
            w_hwio = jnp.transpose(w_oihw, (2, 3, 1, 0))
            self.w9 = w_hwio.reshape(9 * dim_in, dim_in).astype(jnp.bfloat16)
        self.dim_out = dim_in

    def forward_nhwc(self, x1_nhwc, x2_nhwc, row_tile=None):
        """NHWC bf16 fast path (inputs already resized to out_size)."""
        if not self.with_conv:
            return x1_nhwc + x2_nhwc
        return _merge_conv_pallas(x1_nhwc, x2_nhwc, self.w9, self.bias,
                                  row_tile=row_tile)

    def __call__(self, x1, x2, out_size, row_tile=None):
        """x1, x2: NCHW float32; returns NCHW float32 (PyTorch-compatible)."""
        assert x1.shape[:2] == x2.shape[:2]
        assert len(out_size) == 2
        if not self.with_conv:
            return _resize_nchw_f32(x1, out_size) + _resize_nchw_f32(x2, out_size)
        x1n = _resize_to_nhwc_bf16(x1, out_size)
        x2n = _resize_to_nhwc_bf16(x2, out_size)
        out_nhwc = _merge_conv_pallas(x1n, x2n, self.w9, self.bias,
                                      row_tile=row_tile)
        return jnp.transpose(out_nhwc, (0, 3, 1, 2)).astype(jnp.float32)


# ---------------------------------------------------------------------------
# Pure-JAX reference for correctness checking (same bf16 operands)
# ---------------------------------------------------------------------------
def _reference(cell, x1, x2, out_size):
    x1n = _resize_to_nhwc_bf16(x1, out_size)
    x2n = _resize_to_nhwc_bf16(x2, out_size)
    z = jnp.maximum(x1n + x2n, 0.0)                      # sum + ReLU, bf16
    w_hwio = cell.w9.reshape(3, 3, cell.dim_in, cell.dim_in)  # bf16
    y = jax.lax.conv_general_dilated(
        z, w_hwio, window_strides=(1, 1), padding="SAME",
        dimension_numbers=("NHWC", "HWIO", "NHWC"),
        preferred_element_type=jnp.float32)
    y = y + cell.bias[None, None, None, :]
    return jnp.transpose(y, (0, 3, 1, 2))                # NCHW f32


if __name__ == "__main__":
    key = jax.random.PRNGKey(0)
    k1, k2, kp, k3, k4, kq = jax.random.split(key, 6)

    # Case 1: C=128 (lane-dense), nearest upsample + 2x2 max-pool downsample.
    N, C = 2, 128
    out_size = (32, 32)
    x1 = jax.random.normal(k1, (N, C, 16, 16), jnp.float32)   # upsampled 2x
    x2 = jax.random.normal(k2, (N, C, 64, 64), jnp.float32)   # max-pooled 2x

    cell = MergingCellPallas(dim_in=C, with_conv=True, key=kp)
    ref = jax.block_until_ready(_reference(cell, x1, x2, out_size))

    # explicit small row tile -> 4 row tiles per image, exercises the halo path
    out = jax.block_until_ready(cell(x1, x2, out_size, row_tile=8))
    assert out.shape == (N, C, out_size[0], out_size[1]), out.shape
    np.testing.assert_allclose(np.asarray(out), np.asarray(ref),
                               rtol=2e-2, atol=2e-2)

    # auto-picked (generation-aware) tile
    out2 = jax.block_until_ready(cell(x1, x2, out_size))
    np.testing.assert_allclose(np.asarray(out2), np.asarray(ref),
                               rtol=2e-2, atol=2e-2)

    # Case 2: class-default dim_in=256 (K=9*256, N=256 -> full-width MXU),
    # identity resize for x1 and 2x2 max-pool for x2.
    C2 = 256
    out_size2 = (16, 16)
    y1 = jax.random.normal(k3, (1, C2, 16, 16), jnp.float32)
    y2 = jax.random.normal(k4, (1, C2, 32, 32), jnp.float32)
    cell2 = MergingCellPallas(dim_in=C2, with_conv=True, key=kq)
    ref2 = jax.block_until_ready(_reference(cell2, y1, y2, out_size2))
    o2 = jax.block_until_ready(cell2(y1, y2, out_size2))
    np.testing.assert_allclose(np.asarray(o2), np.asarray(ref2),
                               rtol=2e-2, atol=2e-2)

    print("KERNEL_OK")
</pallas_src>

<mosaic_0001>
module attributes {stable_mosaic.version = 11 : i64} {
  func.func @_merge_conv_kernel(%arg0: i32, %arg1: i32, %arg2: memref<1x8x32x128xbf16, #tpu.memory_space<vmem>>, %arg3: memref<1x1x32x128xbf16, #tpu.memory_space<vmem>>, %arg4: memref<1x1x32x128xbf16, #tpu.memory_space<vmem>>, %arg5: memref<1x8x32x128xbf16, #tpu.memory_space<vmem>>, %arg6: memref<1x1x32x128xbf16, #tpu.memory_space<vmem>>, %arg7: memref<1x1x32x128xbf16, #tpu.memory_space<vmem>>, %arg8: memref<1152x128xbf16, #tpu.memory_space<vmem>>, %arg9: memref<1x128xf32, #tpu.memory_space<vmem>>, %arg10: memref<1x8x32x128xbf16, #tpu.memory_space<vmem>>) attributes {dimension_semantics = [#tpu.dimension_semantics<parallel>, #tpu.dimension_semantics<parallel>], iteration_bounds = array<i64: 2, 4>, scalar_prefetch = 0 : i64, scratch_operands = 0 : i64, tpu.core_type = #tpu.core_type<tc>, window_params = [{transform_indices = @transform_0, window_bounds = array<i64: 1, 8, 32, 128>}, {transform_indices = @transform_1, window_bounds = array<i64: 1, 1, 32, 128>}, {transform_indices = @transform_2, window_bounds = array<i64: 1, 1, 32, 128>}, {transform_indices = @transform_3, window_bounds = array<i64: 1, 8, 32, 128>}, {transform_indices = @transform_4, window_bounds = array<i64: 1, 1, 32, 128>}, {transform_indices = @transform_5, window_bounds = array<i64: 1, 1, 32, 128>}, {pipeline_mode = #tpu.pipeline_mode<synchronous>, transform_indices = @transform_6, window_bounds = array<i64: 1152, 128>}, {pipeline_mode = #tpu.pipeline_mode<synchronous>, transform_indices = @transform_7, window_bounds = array<i64: 1, 128>}, {transform_indices = @transform_8, window_bounds = array<i64: 1, 8, 32, 128>}]} {
    %c0 = arith.constant 0 : index
    %c0_0 = arith.constant 0 : index
    %c0_1 = arith.constant 0 : index
    %c0_2 = arith.constant 0 : index
    %0 = vector.load %arg2[%c0, %c0_0, %c0_1, %c0_2] : memref<1x8x32x128xbf16, #tpu.memory_space<vmem>>, vector<1x8x32x128xbf16>
    %1 = vector.shape_cast %0 : vector<1x8x32x128xbf16> to vector<8x32x128xbf16>
    %c0_3 = arith.constant 0 : index
    %c0_4 = arith.constant 0 : index
    %c0_5 = arith.constant 0 : index
    %c0_6 = arith.constant 0 : index
    %2 = vector.load %arg5[%c0_3, %c0_4, %c0_5, %c0_6] : memref<1x8x32x128xbf16, #tpu.memory_space<vmem>>, vector<1x8x32x128xbf16>
    %3 = vector.shape_cast %2 : vector<1x8x32x128xbf16> to vector<8x32x128xbf16>
    %4 = arith.addf %1, %3 : vector<8x32x128xbf16>
    %cst = arith.constant 0.000000e+00 : bf16
    %5 = vector.broadcast %cst : bf16 to vector<8x32x128xbf16>
    %6 = arith.maximumf %4, %5 : vector<8x32x128xbf16>
    %c0_7 = arith.constant 0 : index
    %c0_8 = arith.constant 0 : index
    %c0_9 = arith.constant 0 : index
    %c0_10 = arith.constant 0 : index
    %7 = vector.load %arg3[%c0_7, %c0_8, %c0_9, %c0_10] : memref<1x1x32x128xbf16, #tpu.memory_space<vmem>>, vector<1x1x32x128xbf16>
    %8 = vector.shape_cast %7 : vector<1x1x32x128xbf16> to vector<1x32x128xbf16>
    %c0_11 = arith.constant 0 : index
    %c0_12 = arith.constant 0 : index
    %c0_13 = arith.constant 0 : index
    %c0_14 = arith.constant 0 : index
    %9 = vector.load %arg6[%c0_11, %c0_12, %c0_13, %c0_14] : memref<1x1x32x128xbf16, #tpu.memory_space<vmem>>, vector<1x1x32x128xbf16>
    %10 = vector.shape_cast %9 : vector<1x1x32x128xbf16> to vector<1x32x128xbf16>
    %11 = arith.addf %8, %10 : vector<1x32x128xbf16>
    %cst_15 = arith.constant 0.000000e+00 : bf16
    %12 = vector.broadcast %cst_15 : bf16 to vector<1x32x128xbf16>
    %13 = arith.maximumf %11, %12 : vector<1x32x128xbf16>
    %c0_16 = arith.constant 0 : index
    %c0_17 = arith.constant 0 : index
    %c0_18 = arith.constant 0 : index
    %c0_19 = arith.constant 0 : index
    %14 = vector.load %arg4[%c0_16, %c0_17, %c0_18, %c0_19] : memref<1x1x32x128xbf16, #tpu.memory_space<vmem>>, vector<1x1x32x128xbf16>
    %15 = vector.shape_cast %14 : vector<1x1x32x128xbf16> to vector<1x32x128xbf16>
    %c0_20 = arith.constant 0 : index
    %c0_21 = arith.constant 0 : index
    %c0_22 = arith.constant 0 : index
    %c0_23 = arith.constant 0 : index
    %16 = vector.load %arg7[%c0_20, %c0_21, %c0_22, %c0_23] : memref<1x1x32x128xbf16, #tpu.memory_space<vmem>>, vector<1x1x32x128xbf16>
    %17 = vector.shape_cast %16 : vector<1x1x32x128xbf16> to vector<1x32x128xbf16>
    %18 = arith.addf %15, %17 : vector<1x32x128xbf16>
    %cst_24 = arith.constant 0.000000e+00 : bf16
    %19 = vector.broadcast %cst_24 : bf16 to vector<1x32x128xbf16>
    %20 = arith.maximumf %18, %19 : vector<1x32x128xbf16>
    %c0_i32 = arith.constant 0 : i32
    %21 = arith.cmpi eq, %arg1, %c0_i32 : i32
    %cst_25 = arith.constant 0.000000e+00 : bf16
    %22 = vector.broadcast %cst_25 : bf16 to vector<1x32x128xbf16>
    %23 = arith.select %21, %22, %13 : vector<1x32x128xbf16>
    %c3_i32 = arith.constant 3 : i32
    %24 = arith.cmpi eq, %arg1, %c3_i32 : i32
    %cst_26 = arith.constant 0.000000e+00 : bf16
    %25 = vector.broadcast %cst_26 : bf16 to vector<1x32x128xbf16>
    %26 = arith.select %24, %25, %20 : vector<1x32x128xbf16>
    %27 = tpu.concatenate %23, %6, %26 in 0 : vector<1x32x128xbf16>, vector<8x32x128xbf16>, vector<1x32x128xbf16> -> vector<10x32x128xbf16>
    %cst_27 = arith.constant 0.000000e+00 : bf16
    %28 = vector.broadcast %cst_27 : bf16 to vector<10x1x128xbf16>
    %29 = vector.extract_strided_slice %27 {offsets = [0, 0, 0], sizes = [10, 31, 128], strides = [1, 1, 1]} : vector<10x32x128xbf16> to vector<10x31x128xbf16>
    %30 = tpu.concatenate %28, %29 in 1 : vector<10x1x128xbf16>, vector<10x31x128xbf16> -> vector<10x32x128xbf16>
    %31 = vector.extract_strided_slice %27 {offsets = [0, 1, 0], sizes = [10, 31, 128], strides = [1, 1, 1]} : vector<10x32x128xbf16> to vector<10x31x128xbf16>
    %32 = tpu.concatenate %31, %28 in 1 : vector<10x31x128xbf16>, vector<10x1x128xbf16> -> vector<10x32x128xbf16>
    %33 = tpu.concatenate %30, %27, %32 in 2 : vector<10x32x128xbf16>, vector<10x32x128xbf16>, vector<10x32x128xbf16> -> vector<10x32x384xbf16>
    %34 = vector.extract_strided_slice %33 {offsets = [0, 0, 0], sizes = [8, 32, 384], strides = [1, 1, 1]} : vector<10x32x384xbf16> to vector<8x32x384xbf16>
    %35 = vector.extract_strided_slice %33 {offsets = [1, 0, 0], sizes = [8, 32, 384], strides = [1, 1, 1]} : vector<10x32x384xbf16> to vector<8x32x384xbf16>
    %36 = vector.extract_strided_slice %33 {offsets = [2, 0, 0], sizes = [8, 32, 384], strides = [1, 1, 1]} : vector<10x32x384xbf16> to vector<8x32x384xbf16>
    %37 = tpu.concatenate %34, %35, %36 in 2 : vector<8x32x384xbf16>, vector<8x32x384xbf16>, vector<8x32x384xbf16> -> vector<8x32x1152xbf16>
    %38 = vector.shape_cast %37 : vector<8x32x1152xbf16> to vector<256x1152xbf16>
    %c0_28 = arith.constant 0 : index
    %c0_29 = arith.constant 0 : index
    %39 = vector.load %arg8[%c0_28, %c0_29] : memref<1152x128xbf16, #tpu.memory_space<vmem>>, vector<1152x128xbf16>
    %cst_30 = arith.constant dense<0.000000e+00> : vector<256x128xf32>
    %40 = tpu.matmul %38, %39, %cst_30 {dimension_numbers = #tpu.dot_dimension_numbers<[1], [0], [0], [1], [0, 0, 1, 1], [], []>} : vector<256x1152xbf16>, vector<1152x128xbf16>, vector<256x128xf32> -> vector<256x128xf32>
    %c0_31 = arith.constant 0 : index
    %c0_32 = arith.constant 0 : index
    %41 = vector.load %arg9[%c0_31, %c0_32] : memref<1x128xf32, #tpu.memory_space<vmem>>, vector<1x128xf32>
    %42 = vector.shape_cast %41 : vector<1x128xf32> to vector<128xf32>
    %43 = vector.shape_cast %42 : vector<128xf32> to vector<1x128xf32>
    %44 = vector.broadcast %43 : vector<1x128xf32> to vector<256x128xf32>
    %45 = arith.addf %40, %44 : vector<256x128xf32>
    %46 = vector.shape_cast %45 : vector<256x128xf32> to vector<8x32x128xf32>
    %47 = arith.truncf %46 : vector<8x32x128xf32> to vector<8x32x128xbf16>
    %c0_33 = arith.constant 0 : index
    %c0_34 = arith.constant 0 : index
    %c0_35 = arith.constant 0 : index
    %c0_36 = arith.constant 0 : index
    %48 = vector.load %arg10[%c0_33, %c0_34, %c0_35, %c0_36] : memref<1x8x32x128xbf16, #tpu.memory_space<vmem>>, vector<1x8x32x128xbf16>
    %49 = vector.shape_cast %48 : vector<1x8x32x128xbf16> to vector<8x32x128xbf16>
    %50 = vector.shape_cast %47 : vector<8x32x128xbf16> to vector<1x8x32x128xbf16>
    tpu.vector_store %arg10[%c0_33, %c0_34, %c0_35, %c0_36], %50 {strides = array<i32>} : memref<1x8x32x128xbf16, #tpu.memory_space<vmem>>, vector<1x8x32x128xbf16>,
    return
  }
  func.func @transform_0(%arg0: i32, %arg1: i32) -> (i32, i32, i32, i32) {
    %c0_i32 = arith.constant 0 : i32
    %c0_i32_0 = arith.constant 0 : i32
    %c0_i32_1 = arith.constant 0 : i32
    return %arg0, %arg1, %c0_i32, %c0_i32_0 : i32, i32, i32, i32
  }
  func.func @transform_1(%arg0: i32, %arg1: i32) -> (i32, i32, i32, i32) {
    %c8_i32 = arith.constant 8 : i32
    %0 = arith.muli %arg1, %c8_i32 : i32
    %c1_i32 = arith.constant 1 : i32
    %1 = arith.subi %0, %c1_i32 : i32
    %c0_i32 = arith.constant 0 : i32
    %2 = arith.maxsi %1, %c0_i32 : i32
    %c0_i32_0 = arith.constant 0 : i32
    %c0_i32_1 = arith.constant 0 : i32
    %c0_i32_2 = arith.constant 0 : i32
    return %arg0, %2, %c0_i32_0, %c0_i32_1 : i32, i32, i32, i32
  }
  func.func @transform_2(%arg0: i32, %arg1: i32) -> (i32, i32, i32, i32) {
    %c8_i32 = arith.constant 8 : i32
    %0 = arith.muli %arg1, %c8_i32 : i32
    %c8_i32_0 = arith.constant 8 : i32
    %1 = arith.addi %0, %c8_i32_0 : i32
    %c31_i32 = arith.constant 31 : i32
    %2 = arith.minsi %1, %c31_i32 : i32
    %c0_i32 = arith.constant 0 : i32
    %c0_i32_1 = arith.constant 0 : i32
    %c0_i32_2 = arith.constant 0 : i32
    return %arg0, %2, %c0_i32, %c0_i32_1 : i32, i32, i32, i32
  }
  func.func @transform_3(%arg0: i32, %arg1: i32) -> (i32, i32, i32, i32) {
    %c0_i32 = arith.constant 0 : i32
    %c0_i32_0 = arith.constant 0 : i32
    %c0_i32_1 = arith.constant 0 : i32
    return %arg0, %arg1, %c0_i32, %c0_i32_0 : i32, i32, i32, i32
  }
  func.func @transform_4(%arg0: i32, %arg1: i32) -> (i32, i32, i32, i32) {
    %c8_i32 = arith.constant 8 : i32
    %0 = arith.muli %arg1, %c8_i32 : i32
    %c1_i32 = arith.constant 1 : i32
    %1 = arith.subi %0, %c1_i32 : i32
    %c0_i32 = arith.constant 0 : i32
    %2 = arith.maxsi %1, %c0_i32 : i32
    %c0_i32_0 = arith.constant 0 : i32
    %c0_i32_1 = arith.constant 0 : i32
    %c0_i32_2 = arith.constant 0 : i32
    return %arg0, %2, %c0_i32_0, %c0_i32_1 : i32, i32, i32, i32
  }
  func.func @transform_5(%arg0: i32, %arg1: i32) -> (i32, i32, i32, i32) {
    %c8_i32 = arith.constant 8 : i32
    %0 = arith.muli %arg1, %c8_i32 : i32
    %c8_i32_0 = arith.constant 8 : i32
    %1 = arith.addi %0, %c8_i32_0 : i32
    %c31_i32 = arith.constant 31 : i32
    %2 = arith.minsi %1, %c31_i32 : i32
    %c0_i32 = arith.constant 0 : i32
    %c0_i32_1 = arith.constant 0 : i32
    %c0_i32_2 = arith.constant 0 : i32
    return %arg0, %2, %c0_i32, %c0_i32_1 : i32, i32, i32, i32
  }
  func.func @transform_6(%arg0: i32, %arg1: i32) -> (i32, i32) {
    %c0_i32 = arith.constant 0 : i32
    %c0_i32_0 = arith.constant 0 : i32
    %c0_i32_1 = arith.constant 0 : i32
    return %c0_i32, %c0_i32_0 : i32, i32
  }
  func.func @transform_7(%arg0: i32, %arg1: i32) -> (i32, i32) {
    %c0_i32 = arith.constant 0 : i32
    %c0_i32_0 = arith.constant 0 : i32
    %c0_i32_1 = arith.constant 0 : i32
    return %c0_i32, %c0_i32_0 : i32, i32
  }
  func.func @transform_8(%arg0: i32, %arg1: i32) -> (i32, i32, i32, i32) {
    %c0_i32 = arith.constant 0 : i32
    %c0_i32_0 = arith.constant 0 : i32
    %c0_i32_1 = arith.constant 0 : i32
    return %arg0, %arg1, %c0_i32, %c0_i32_0 : i32, i32, i32, i32
  }
}

</mosaic_0001>

<llo_original>
// kernel: tpu_custom_call.1
$region0: #{tpu_custom_call.1}
  #allocation0 [shape = 'u32[]', space=smem, size = 0x4, offset = 0x4, fixed_abs, tag = 'smem constant byte address 0x4 - core index']
  #allocation1 [shape = 'u32[72,128]{1,0:T(1,128)}', space=vmem, size = 0x9000, scoped, tag = 'internal scratch']
  %s0 = inlined_call_operand.hbm [shape: bf16[2,32,32,128], index: 0, kind: input, shape index: {}]
  %s1 = inlined_call_operand.hbm [shape: bf16[2,32,32,128], index: 1, kind: input, shape index: {}]
  %s2 = inlined_call_operand.hbm [shape: bf16[2,32,32,128], index: 2, kind: input, shape index: {}]
  %s3 = inlined_call_operand.hbm [shape: bf16[2,32,32,128], index: 3, kind: input, shape index: {}]
  %s4 = inlined_call_operand.hbm [shape: bf16[2,32,32,128], index: 4, kind: input, shape index: {}]
  %s5 = inlined_call_operand.hbm [shape: bf16[2,32,32,128], index: 5, kind: input, shape index: {}]
  %s6 = inlined_call_operand.hbm [shape: bf16[1152,128], index: 6, kind: input, shape index: {}]
  %s7 = inlined_call_operand.vmem [shape: f32[1,128], index: 7, kind: input, shape index: {}]
  %s8 = inlined_call_operand.hbm [shape: bf16[2,32,32,128], index: 8, kind: output, shape index: {}]
  %s9 = sld [smem:[#allocation0]]
  $region93: #{tpu_custom_call.1} parent=0
    _
  %s11 = ssub.s32 1, %s9
  %s12 = scalar_select 0, %s11, %s9
  $region1: #{tpu_custom_call.1} parent=0
    #allocation2 [shape = 'u8[131072]{0}', space=vmem, size = 0x20000, scoped, tag = 'input window, operand 0']
    #allocation3 [shape = 's32[2]{0}', space=sflag, size = 0x8, scoped, tag = 'scoped memory for tpu_custom_call.1']
    #allocation4 [shape = 's32[2]{0}', space=sflag, size = 0x8, scoped, tag = 'scoped memory for tpu_custom_call.1']
    #allocation5 [shape = 'u8[16384]{0}', space=vmem, size = 0x4000, scoped, tag = 'input window, operand 1']
    #allocation6 [shape = 's32[2]{0}', space=sflag, size = 0x8, scoped, tag = 'scoped memory for tpu_custom_call.1']
    #allocation7 [shape = 'u8[16384]{0}', space=vmem, size = 0x4000, scoped, tag = 'input window, operand 2']
    #allocation8 [shape = 'u8[131072]{0}', space=vmem, size = 0x20000, scoped, tag = 'input window, operand 3']
    #allocation9 [shape = 's32[2]{0}', space=sflag, size = 0x8, scoped, tag = 'scoped memory for tpu_custom_call.1']
    #allocation10 [shape = 'u8[16384]{0}', space=vmem, size = 0x4000, scoped, tag = 'input window, operand 4']
    #allocation11 [shape = 'u8[16384]{0}', space=vmem, size = 0x4000, scoped, tag = 'input window, operand 5']
    #allocation12 [shape = 's32[2]{0}', space=sflag, size = 0x8, scoped, tag = 'scoped memory for tpu_custom_call.1']
    #allocation13 [shape = 'u8[294912]{0}', space=vmem, size = 0x48000, scoped, tag = 'input window, operand 6, single buffered']
    #allocation14 [shape = 'u8[131072]{0}', space=vmem, size = 0x20000, scoped, tag = 'output window, operand 0']
    %13 = vsyncpa [#allocation3], 0
    %s14 = scalar_lea.sflag [#allocation3], 1
    %15 = vsyncpa %s14, 0
    %16 = vsyncpa [#allocation6], 0
    %s17 = scalar_lea.sflag [#allocation6], 1
    %18 = vsyncpa %s17, 0
    %19 = vsyncpa [#allocation9], 0
    %s20 = scalar_lea.sflag [#allocation9], 1
    %21 = vsyncpa %s20, 0
    %22 = vsyncpa [#allocation12], 0
    %s23 = scalar_lea.sflag [#allocation12], 1
    %24 = vsyncpa %s23, 0
    %25 = vsyncpa [#allocation4], 0
    %s26 = scalar_lea.sflag [#allocation4], 1
    %27 = vsyncpa %s26, 0
    loop: start=0, step=1, limit=10
    $region2: #{tpu_custom_call.1} parent=1 // loop_pre_header
      _
    $region3: #{tpu_custom_call.1} parent=1 // loop_header
      %s29 = sphi 0, %s33
      %p30 = scmp.ge.s32.totalorder %s29, 10
      %s36 = sphi 0, %s48
      %s37 = sphi 0, %s44
      %s38 = sphi 0, %s36
      %s39 = sphi 0, %s37
      %s40 = sphi 0, %s38
      %s41 = sphi 0, %s39
      %s53 = sphi 0, %s55
      %s56 = sphi 0, %s53
      %s57 = sphi 0, %s56
      %s73 = sphi 0, %s57
      %s89 = sphi 0, %s91
      %s92 = sphi 0, %s89
      %s93 = sphi 0, %s92
      %s109 = sphi 0, %s93
      %s125 = sphi 0, %s127
      %s128 = sphi 0, %s125
      %s129 = sphi 0, %s128
      %s145 = sphi 0, %s129
      %s153 = sphi 0, %s155
      %s156 = sphi 0, %s153
      %s157 = sphi 0, %s156
      %s173 = sphi 0, %s157
      %s189 = sphi 0, %s191
      %s192 = sphi 0, %s189
      %s193 = sphi 0, %s192
      %s209 = sphi 0, %s193
      %s225 = sphi 0, %s227
      %s228 = sphi 0, %s225
      %s229 = sphi 0, %s228
      %s245 = sphi 0, %s229
      %s249 = sphi 0, %s249
      %s251 = sphi 0, %s249
      %s252 = sphi 0, %s251
      %s266 = sphi 0, %s252
      %s270 = sphi 0, %s270
      %s272 = sphi 0, %s270
      %s273 = sphi 0, %s272
      %s287 = sphi 0, %s273
      %s295 = sphi 0, %s297
      %s298 = sphi 0, %s295
      %s299 = sphi 0, %s298
      %s315 = sphi 0, %s299
    $region4: #{tpu_custom_call.1} parent=1 // loop_header_branch
      %32 = sbr.rel (%p30) target = $region8
    $region5: #{tpu_custom_call.1} parent=1 // loop_body
      %s34 = ssub.s32 %s29, 1
      %s35 = ssub.s32 %s29, 2
      %s42 = sadd.s32 1, %s37
      %p43 = scmp.ge.s32.totalorder %s42, 4
      %s44 = scalar_select %p43, 0, %s42
      %s45 = sadd.s32 1, %s36
      %s46 = scalar_select %p43, %s45, %s36
      %p47 = scmp.ge.s32.totalorder %s46, 2
      %s48 = scalar_select %p47, 0, %s46
      %s49 = ssub.s32 %s36, %s48
      %s50 = ssub.s32 %s37, %s44
      %s51 = sor.u32 %s49, %s50
      %p52 = scmp.eq.s32.totalorder %s51, 0
      %s54 = sadd.s32 %s53, 1
      %s55 = scalar_select %p52, %s53, %s54
      %p58 = pneg %p52
      %p59 = scmp.eq.s32.totalorder %s29, 7
      %p60 = por %p58, %p59
      %p61 = scmp.ne.s32.totalorder %s53, %s56
      %p62 = scmp.eq.s32.totalorder %s29, 0
      %p63 = por %p61, %p62
      %p64 = scmp.ne.s32.totalorder %s53, %s56
      %p65 = scmp.eq.s32.totalorder %s34, 7
      %p66 = por %p64, %p65
      %p67 = scmp.ne.s32.totalorder %s56, %s57
      %p68 = scmp.eq.s32.totalorder %s34, 0
      %p69 = por %p67, %p68
      %p70 = scmp.ne.s32.totalorder %s56, %s57
      %p71 = scmp.eq.s32.totalorder %s35, 7
      %p72 = por %p70, %p71
      %p74 = scmp.ne.s32.totalorder %s57, %s73
      %p75 = scmp.eq.s32.totalorder %s35, 0
      %p76 = por %p74, %p75
      %s77 = smul.u32 %s37, 8
      %s78 = ssub.s32 %s77, 1
      %p79 = scmp.gt.s32.totalorder %s78, 0
      %s80 = scalar_select %p79, %s78, 0
      %s81 = smul.u32 %s44, 8
      %s82 = ssub.s32 %s81, 1
      %p83 = scmp.gt.s32.totalorder %s82, 0
      %s84 = scalar_select %p83, %s82, 0
      %s85 = ssub.s32 %s36, %s48
      %s86 = ssub.s32 %s80, %s84
      %s87 = sor.u32 %s85, %s86
      %p88 = scmp.eq.s32.totalorder %s87, 0
      %s90 = sadd.s32 %s89, 1
      %s91 = scalar_select %p88, %s89, %s90
      %p94 = pneg %p88
      %p95 = scmp.eq.s32.totalorder %s29, 7
      %p96 = por %p94, %p95
      %p97 = scmp.ne.s32.totalorder %s89, %s92
      %p98 = scmp.eq.s32.totalorder %s29, 0
      %p99 = por %p97, %p98
      %p100 = scmp.ne.s32.totalorder %s89, %s92
      %p101 = scmp.eq.s32.totalorder %s34, 7
      %p102 = por %p100, %p101
      %p103 = scmp.ne.s32.totalorder %s92, %s93
      %p104 = scmp.eq.s32.totalorder %s34, 0
      %p105 = por %p103, %p104
      %p106 = scmp.ne.s32.totalorder %s92, %s93
      %p107 = scmp.eq.s32.totalorder %s35, 7
      %p108 = por %p106, %p107
      %p110 = scmp.ne.s32.totalorder %s93, %s109
      %p111 = scmp.eq.s32.totalorder %s35, 0
      %p112 = por %p110, %p111
      %s113 = smul.u32 %s37, 8
      %s114 = sadd.s32 %s113, 8
      %p115 = scmp.lt.s32.totalorder %s114, 31
      %s116 = scalar_select %p115, %s114, 31
      %s117 = smul.u32 %s44, 8
      %s118 = sadd.s32 %s117, 8
      %p119 = scmp.lt.s32.totalorder %s118, 31
      %s120 = scalar_select %p119, %s118, 31
      %s121 = ssub.s32 %s36, %s48
      %s122 = ssub.s32 %s116, %s120
      %s123 = sor.u32 %s121, %s122
      %p124 = scmp.eq.s32.totalorder %s123, 0
      %s126 = sadd.s32 %s125, 1
      %s127 = scalar_select %p124, %s125, %s126
      %p130 = pneg %p124
      %p131 = scmp.eq.s32.totalorder %s29, 7
      %p132 = por %p130, %p131
      %p133 = scmp.ne.s32.totalorder %s125, %s128
      %p134 = scmp.eq.s32.totalorder %s29, 0
      %p135 = por %p133, %p134
      %p136 = scmp.ne.s32.totalorder %s125, %s128
      %p137 = scmp.eq.s32.totalorder %s34, 7
      %p138 = por %p136, %p137
      %p139 = scmp.ne.s32.totalorder %s128, %s129
      %p140 = scmp.eq.s32.totalorder %s34, 0
      %p141 = por %p139, %p140
      %p142 = scmp.ne.s32.totalorder %s128, %s129
      %p143 = scmp.eq.s32.totalorder %s35, 7
      %p144 = por %p142, %p143
      %p146 = scmp.ne.s32.totalorder %s129, %s145
      %p147 = scmp.eq.s32.totalorder %s35, 0
      %p148 = por %p146, %p147
      %s149 = ssub.s32 %s36, %s48
      %s150 = ssub.s32 %s37, %s44
      %s151 = sor.u32 %s149, %s150
      %p152 = scmp.eq.s32.totalorder %s151, 0
      %s154 = sadd.s32 %s153, 1
      %s155 = scalar_select %p152, %s153, %s154
      %p158 = pneg %p152
      %p159 = scmp.eq.s32.totalorder %s29, 7
      %p160 = por %p158, %p159
      %p161 = scmp.ne.s32.totalorder %s153, %s156
      %p162 = scmp.eq.s32.totalorder %s29, 0
      %p163 = por %p161, %p162
      %p164 = scmp.ne.s32.totalorder %s153, %s156
      %p165 = scmp.eq.s32.totalorder %s34, 7
      %p166 = por %p164, %p165
      %p167 = scmp.ne.s32.totalorder %s156, %s157
      %p168 = scmp.eq.s32.totalorder %s34, 0
      %p169 = por %p167, %p168
      %p170 = scmp.ne.s32.totalorder %s156, %s157
      %p171 = scmp.eq.s32.totalorder %s35, 7
      %p172 = por %p170, %p171
      %p174 = scmp.ne.s32.totalorder %s157, %s173
      %p175 = scmp.eq.s32.totalorder %s35, 0
      %p176 = por %p174, %p175
      %s177 = smul.u32 %s37, 8
      %s178 = ssub.s32 %s177, 1
      %p179 = scmp.gt.s32.totalorder %s178, 0
      %s180 = scalar_select %p179, %s178, 0
      %s181 = smul.u32 %s44, 8
      %s182 = ssub.s32 %s181, 1
      %p183 = scmp.gt.s32.totalorder %s182, 0
      %s184 = scalar_select %p183, %s182, 0
      %s185 = ssub.s32 %s36, %s48
      %s186 = ssub.s32 %s180, %s184
      %s187 = sor.u32 %s185, %s186
      %p188 = scmp.eq.s32.totalorder %s187, 0
      %s190 = sadd.s32 %s189, 1
      %s191 = scalar_select %p188, %s189, %s190
      %p194 = pneg %p188
      %p195 = scmp.eq.s32.totalorder %s29, 7
      %p196 = por %p194, %p195
      %p197 = scmp.ne.s32.totalorder %s189, %s192
      %p198 = scmp.eq.s32.totalorder %s29, 0
      %p199 = por %p197, %p198
      %p200 = scmp.ne.s32.totalorder %s189, %s192
      %p201 = scmp.eq.s32.totalorder %s34, 7
      %p202 = por %p200, %p201
      %p203 = scmp.ne.s32.totalorder %s192, %s193
      %p204 = scmp.eq.s32.totalorder %s34, 0
      %p205 = por %p203, %p204
      %p206 = scmp.ne.s32.totalorder %s192, %s193
      %p207 = scmp.eq.s32.totalorder %s35, 7
      %p208 = por %p206, %p207
      %p210 = scmp.ne.s32.totalorder %s193, %s209
      %p211 = scmp.eq.s32.totalorder %s35, 0
      %p212 = por %p210, %p211
      %s213 = smul.u32 %s37, 8
      %s214 = sadd.s32 %s213, 8
      %p215 = scmp.lt.s32.totalorder %s214, 31
      %s216 = scalar_select %p215, %s214, 31
      %s217 = smul.u32 %s44, 8
      %s218 = sadd.s32 %s217, 8
      %p219 = scmp.lt.s32.totalorder %s218, 31
      %s220 = scalar_select %p219, %s218, 31
      %s221 = ssub.s32 %s36, %s48
      %s222 = ssub.s32 %s216, %s220
      %s223 = sor.u32 %s221, %s222
      %p224 = scmp.eq.s32.totalorder %s223, 0
      %s226 = sadd.s32 %s225, 1
      %s227 = scalar_select %p224, %s225, %s226
      %p230 = pneg %p224
      %p231 = scmp.eq.s32.totalorder %s29, 7
      %p232 = por %p230, %p231
      %p233 = scmp.ne.s32.totalorder %s225, %s228
      %p234 = scmp.eq.s32.totalorder %s29, 0
      %p235 = por %p233, %p234
      %p236 = scmp.ne.s32.totalorder %s225, %s228
      %p237 = scmp.eq.s32.totalorder %s34, 7
      %p238 = por %p236, %p237
      %p239 = scmp.ne.s32.totalorder %s228, %s229
      %p240 = scmp.eq.s32.totalorder %s34, 0
      %p241 = por %p239, %p240
      %p242 = scmp.ne.s32.totalorder %s228, %s229
      %p243 = scmp.eq.s32.totalorder %s35, 7
      %p244 = por %p242, %p243
      %p246 = scmp.ne.s32.totalorder %s229, %s245
      %p247 = scmp.eq.s32.totalorder %s35, 0
      %p248 = por %p246, %p247
      %s250 = sadd.s32 %s249, 1
      %p253 = scmp.eq.s32.totalorder %s29, 7
      %p254 = scmp.ne.s32.totalorder %s249, %s251
      %p255 = scmp.eq.s32.totalorder %s29, 0
      %p256 = por %p254, %p255
      %p257 = scmp.ne.s32.totalorder %s249, %s251
      %p258 = scmp.eq.s32.totalorder %s34, 7
      %p259 = por %p257, %p258
      %p260 = scmp.ne.s32.totalorder %s251, %s252
      %p261 = scmp.eq.s32.totalorder %s34, 0
      %p262 = por %p260, %p261
      %p263 = scmp.ne.s32.totalorder %s251, %s252
      %p264 = scmp.eq.s32.totalorder %s35, 7
      %p265 = por %p263, %p264
      %p267 = scmp.ne.s32.totalorder %s252, %s266
      %p268 = scmp.eq.s32.totalorder %s35, 0
      %p269 = por %p267, %p268
      %s271 = sadd.s32 %s270, 1
      %p274 = scmp.eq.s32.totalorder %s29, 7
      %p275 = scmp.ne.s32.totalorder %s270, %s272
      %p276 = scmp.eq.s32.totalorder %s29, 0
      %p277 = por %p275, %p276
      %p278 = scmp.ne.s32.totalorder %s270, %s272
      %p279 = scmp.eq.s32.totalorder %s34, 7
      %p280 = por %p278, %p279
      %p281 = scmp.ne.s32.totalorder %s272, %s273
      %p282 = scmp.eq.s32.totalorder %s34, 0
      %p283 = por %p281, %p282
      %p284 = scmp.ne.s32.totalorder %s272, %s273
      %p285 = scmp.eq.s32.totalorder %s35, 7
      %p286 = por %p284, %p285
      %p288 = scmp.ne.s32.totalorder %s273, %s287
      %p289 = scmp.eq.s32.totalorder %s35, 0
      %p290 = por %p288, %p289
      %s291 = ssub.s32 %s36, %s48
      %s292 = ssub.s32 %s37, %s44
      %s293 = sor.u32 %s291, %s292
      %p294 = scmp.eq.s32.totalorder %s293, 0
      %s296 = sadd.s32 %s295, 1
      %s297 = scalar_select %p294, %s295, %s296
      %p300 = pneg %p294
      %p301 = scmp.eq.s32.totalorder %s29, 7
      %p302 = por %p300, %p301
      %p303 = scmp.ne.s32.totalorder %s295, %s298
      %p304 = scmp.eq.s32.totalorder %s29, 0
      %p305 = por %p303, %p304
      %p306 = scmp.ne.s32.totalorder %s295, %s298
      %p307 = scmp.eq.s32.totalorder %s34, 7
      %p308 = por %p306, %p307
      %p309 = scmp.ne.s32.totalorder %s298, %s299
      %p310 = scmp.eq.s32.totalorder %s34, 0
      %p311 = por %p309, %p310
      %p312 = scmp.ne.s32.totalorder %s298, %s299
      %p313 = scmp.eq.s32.totalorder %s35, 7
      %p314 = por %p312, %p313
      %p316 = scmp.ne.s32.totalorder %s299, %s315
      %p317 = scmp.eq.s32.totalorder %s35, 0
      %p318 = por %p316, %p317
      %p319 = scmp.le.s32.totalorder 1, %s29
      %p320 = scmp.lt.s32.totalorder %s29, 9
      %p321 = pnand %p319, %p320
      %p322 = pneg %p321
      // Predicated region
      $region9: #{tpu_custom_call.1} parent=5 // pred_check
        _
      $region10: #{tpu_custom_call.1} parent=5 // pred_check_branch
        %324 = sbr.rel (%p321) target = $region12
      $region11: #{tpu_custom_call.1} parent=5 // pred_region
        %s325 = ssub.s32 %s29, 1
        // Predicated region
        $region13: #{tpu_custom_call.1} parent=11 // pred_check
          %p326 = pneg %p262
        $region14: #{tpu_custom_call.1} parent=11 // pred_check_branch
          %328 = sbr.rel (%p326) target = $region16
        $region15: #{tpu_custom_call.1} parent=11 // pred_region
          %330 = vsyncadd [#allocation12], 0
          %s331 = sshll.u32 %s6, 4
          %s332 = int_to_ptr.hbm [resolvable:$true] %s331
          %s333 = sshll.u32 [#allocation13], 4
          %s334 = int_to_ptr.vmem [resolvable:$true] %s333
          %339 = dma.hbm_to_vmem [thread:$0]  %s332, 9216, %s334, [#allocation12], 64, 64, 4
        $region16: #{tpu_custom_call.1} parent=11 // pred_fallthru
          _
        // Predicated region
        $region17: #{tpu_custom_call.1} parent=11 // pred_check
          %p340 = pneg %p283
        $region18: #{tpu_custom_call.1} parent=11 // pred_check_branch
          %342 = sbr.rel (%p340) target = $region20
        $region19: #{tpu_custom_call.1} parent=11 // pred_region
          _
        $region20: #{tpu_custom_call.1} parent=11 // pred_fallthru
          _
      $region12: #{tpu_custom_call.1} parent=5 // pred_fallthru
        _
      %p343 = scmp.lt.s32.totalorder %s29, 8
      // Predicated region
      $region21: #{tpu_custom_call.1} parent=5 // pred_check
        %p344 = pneg %p343
      $region22: #{tpu_custom_call.1} parent=5 // pred_check_branch
        %346 = sbr.rel (%p344) target = $region24
      $region23: #{tpu_custom_call.1} parent=5 // pred_region
        // Predicated region
        $region25: #{tpu_custom_call.1} parent=23 // pred_check
          %p347 = pneg %p63
        $region26: #{tpu_custom_call.1} parent=23 // pred_check_branch
          %349 = sbr.rel (%p347) target = $region28
        $region27: #{tpu_custom_call.1} parent=23 // pred_region
          %s350 = sand.u32 %s53, 1
          %s351 = scalar_lea.sflag [#allocation3], %s350
          %s352 = sand.u32 %s53, 1
          %s353 = smul.addr %s352, 128
          %s354 = scalar_lea.vmem [#allocation2], %s353
          %s355 = smul.u32 8, %s37
          %357 = vsyncadd %s351, 0
          %s358 = smul.addr %s355, 4
          %s359 = smul.addr %s36, 128
          %s360 = sadd.s32 %s358, %s359
          %s361 = smul.addr %s360, 4
          %s362 = scalar_lea.hbm %s0, %s361
          %s363 = sshll.u32 %s362, 4
          %s364 = int_to_ptr.hbm [resolvable:$true] %s363
          %s365 = sshll.u32 %s354, 4
          %s366 = int_to_ptr.vmem [resolvable:$true] %s365
          %371 = dma.hbm_to_vmem [thread:$0]  %s364, 2048, %s366, %s351, 64, 64, 4
        $region28: #{tpu_custom_call.1} parent=23 // pred_fallthru
          _
        // Predicated region
        $region29: #{tpu_custom_call.1} parent=23 // pred_check
          %p372 = pneg %p99
        $region30: #{tpu_custom_call.1} parent=23 // pred_check_branch
          %374 = sbr.rel (%p372) target = $region32
        $region31: #{tpu_custom_call.1} parent=23 // pred_region
          %s375 = sand.u32 %s29, 1
          %s376 = scalar_lea.sflag [#allocation6], %s375
          %s377 = sand.u32 %s89, 1
          %s378 = smul.addr %s377, 16
          %s379 = scalar_lea.vmem [#allocation5], %s378
          %s380 = smul.u32 %s37, 8
          %s381 = ssub.s32 %s380, 1
          %p382 = scmp.gt.s32.totalorder %s381, 0
          %s383 = scalar_select %p382, %s381, 0
          %385 = vsyncadd %s376, 0
          %s386 = smul.addr %s383, 4
          %s387 = smul.addr %s36, 128
          %s388 = sadd.s32 %s386, %s387
          %s389 = smul.addr %s388, 4
          %s390 = scalar_lea.hbm %s1, %s389
          %s391 = sshll.u32 %s390, 4
          %s392 = int_to_ptr.hbm [resolvable:$true] %s391
          %s393 = sshll.u32 %s379, 4
          %s394 = int_to_ptr.vmem [resolvable:$true] %s393
          %399 = dma.hbm_to_vmem [thread:$0]  %s392, 256, %s394, %s376, 64, 64, 4
        $region32: #{tpu_custom_call.1} parent=23 // pred_fallthru
          _
        // Predicated region
        $region33: #{tpu_custom_call.1} parent=23 // pred_check
          %p400 = pneg %p135
        $region34: #{tpu_custom_call.1} parent=23 // pred_check_branch
          %402 = sbr.rel (%p400) target = $region36
        $region35: #{tpu_custom_call.1} parent=23 // pred_region
          %s403 = sand.u32 %s29, 1
          %s404 = scalar_lea.sflag [#allocation6], %s403
          %s405 = sand.u32 %s125, 1
          %s406 = smul.addr %s405, 16
          %s407 = scalar_lea.vmem [#allocation7], %s406
          %s408 = smul.u32 %s37, 8
          %s409 = sadd.s32 %s408, 8
          %p410 = scmp.lt.s32.totalorder %s409, 31
          %s411 = scalar_select %p410, %s409, 31
          %413 = vsyncadd %s404, 0
          %s414 = smul.addr %s411, 4
          %s415 = smul.addr %s36, 128
          %s416 = sadd.s32 %s414, %s415
          %s417 = smul.addr %s416, 4
          %s418 = scalar_lea.hbm %s2, %s417
          %s419 = sshll.u32 %s418, 4
          %s420 = int_to_ptr.hbm [resolvable:$true] %s419
          %s421 = sshll.u32 %s407, 4
          %s422 = int_to_ptr.vmem [resolvable:$true] %s421
          %427 = dma.hbm_to_vmem [thread:$0]  %s420, 256, %s422, %s404, 64, 64, 4
        $region36: #{tpu_custom_call.1} parent=23 // pred_fallthru
          _
        // Predicated region
        $region37: #{tpu_custom_call.1} parent=23 // pred_check
          %p428 = pneg %p163
        $region38: #{tpu_custom_call.1} parent=23 // pred_check_branch
          %430 = sbr.rel (%p428) target = $region40
        $region39: #{tpu_custom_call.1} parent=23 // pred_region
          %s431 = sand.u32 %s29, 1
          %s432 = scalar_lea.sflag [#allocation9], %s431
          %s433 = sand.u32 %s153, 1
          %s434 = smul.addr %s433, 128
          %s435 = scalar_lea.vmem [#allocation8], %s434
          %s436 = smul.u32 8, %s37
          %438 = vsyncadd %s432, 0
          %s439 = smul.addr %s436, 4
          %s440 = smul.addr %s36, 128
          %s441 = sadd.s32 %s439, %s440
          %s442 = smul.addr %s441, 4
          %s443 = scalar_lea.hbm %s3, %s442
          %s444 = sshll.u32 %s443, 4
          %s445 = int_to_ptr.hbm [resolvable:$true] %s444
          %s446 = sshll.u32 %s435, 4
          %s447 = int_to_ptr.vmem [resolvable:$true] %s446
          %452 = dma.hbm_to_vmem [thread:$0]  %s445, 2048, %s447, %s432, 64, 64, 4
        $region40: #{tpu_custom_call.1} parent=23 // pred_fallthru
          _
        // Predicated region
        $region41: #{tpu_custom_call.1} parent=23 // pred_check
          %p453 = pneg %p199
        $region42: #{tpu_custom_call.1} parent=23 // pred_check_branch
          %455 = sbr.rel (%p453) target = $region44
        $region43: #{tpu_custom_call.1} parent=23 // pred_region
          %s456 = sand.u32 %s29, 1
          %s457 = scalar_lea.sflag [#allocation9], %s456
          %s458 = sand.u32 %s189, 1
          %s459 = smul.addr %s458, 16
          %s460 = scalar_lea.vmem [#allocation10], %s459
          %s461 = smul.u32 %s37, 8
          %s462 = ssub.s32 %s461, 1
          %p463 = scmp.gt.s32.totalorder %s462, 0
          %s464 = scalar_select %p463, %s462, 0
          %466 = vsyncadd %s457, 0
          %s467 = smul.addr %s464, 4
          %s468 = smul.addr %s36, 128
          %s469 = sadd.s32 %s467, %s468
          %s470 = smul.addr %s469, 4
          %s471 = scalar_lea.hbm %s4, %s470
          %s472 = sshll.u32 %s471, 4
          %s473 = int_to_ptr.hbm [resolvable:$true] %s472
          %s474 = sshll.u32 %s460, 4
          %s475 = int_to_ptr.vmem [resolvable:$true] %s474
          %480 = dma.hbm_to_vmem [thread:$0]  %s473, 256, %s475, %s457, 64, 64, 4
        $region44: #{tpu_custom_call.1} parent=23 // pred_fallthru
          _
        // Predicated region
        $region45: #{tpu_custom_call.1} parent=23 // pred_check
          %p481 = pneg %p235
        $region46: #{tpu_custom_call.1} parent=23 // pred_check_branch
          %483 = sbr.rel (%p481) target = $region48
        $region47: #{tpu_custom_call.1} parent=23 // pred_region
          %s484 = sand.u32 %s29, 1
          %s485 = scalar_lea.sflag [#allocation12], %s484
          %s486 = sand.u32 %s225, 1
          %s487 = smul.addr %s486, 16
          %s488 = scalar_lea.vmem [#allocation11], %s487
          %s489 = smul.u32 %s37, 8
          %s490 = sadd.s32 %s489, 8
          %p491 = scmp.lt.s32.totalorder %s490, 31
          %s492 = scalar_select %p491, %s490, 31
          %494 = vsyncadd %s485, 0
          %s495 = smul.addr %s492, 4
          %s496 = smul.addr %s36, 128
          %s497 = sadd.s32 %s495, %s496
          %s498 = smul.addr %s497, 4
          %s499 = scalar_lea.hbm %s5, %s498
          %s500 = sshll.u32 %s499, 4
          %s501 = int_to_ptr.hbm [resolvable:$true] %s500
          %s502 = sshll.u32 %s488, 4
          %s503 = int_to_ptr.vmem [resolvable:$true] %s502
          %508 = dma.hbm_to_vmem [thread:$0]  %s501, 256, %s503, %s485, 64, 64, 4
        $region48: #{tpu_custom_call.1} parent=23 // pred_fallthru
          _
      $region24: #{tpu_custom_call.1} parent=5 // pred_fallthru
        _
      %p509 = scmp.le.s32.totalorder 1, %s29
      %p510 = scmp.lt.s32.totalorder %s29, 9
      %p511 = pnand %p509, %p510
      %p512 = pneg %p511
      // Predicated region
      $region49: #{tpu_custom_call.1} parent=5 // pred_check
        _
      $region50: #{tpu_custom_call.1} parent=5 // pred_check_branch
        %514 = sbr.rel (%p511) target = $region52
      $region51: #{tpu_custom_call.1} parent=5 // pred_region
        %s515 = ssub.s32 %s29, 1
        %s516 = sand.u32 %s56, 1
        %s517 = scalar_lea.sflag [#allocation3], %s516
        %s518 = sand.u32 %s56, 1
        %s519 = smul.addr %s518, 128
        %s520 = scalar_lea.vmem [#allocation2], %s519
        // Predicated region
        $region53: #{tpu_custom_call.1} parent=51 // pred_check
          %p521 = pneg %p69
        $region54: #{tpu_custom_call.1} parent=51 // pred_check_branch
          %523 = sbr.rel (%p521) target = $region56
        $region55: #{tpu_custom_call.1} parent=51 // pred_region
          %525 = dma.done %s517, 2048
        $region56: #{tpu_custom_call.1} parent=51 // pred_fallthru
          _
        %s526 = sand.u32 %s34, 1
        %s527 = scalar_lea.sflag [#allocation6], %s526
        %s528 = sand.u32 %s92, 1
        %s529 = smul.addr %s528, 16
        %s530 = scalar_lea.vmem [#allocation5], %s529
        // Predicated region
        $region57: #{tpu_custom_call.1} parent=51 // pred_check
          %p531 = pneg %p105
        $region58: #{tpu_custom_call.1} parent=51 // pred_check_branch
          %533 = sbr.rel (%p531) target = $region60
        $region59: #{tpu_custom_call.1} parent=51 // pred_region
          %535 = dma.done %s527, 256
        $region60: #{tpu_custom_call.1} parent=51 // pred_fallthru
          _
        %s536 = sand.u32 %s34, 1
        %s537 = scalar_lea.sflag [#allocation6], %s536
        %s538 = sand.u32 %s128, 1
        %s539 = smul.addr %s538, 16
        %s540 = scalar_lea.vmem [#allocation7], %s539
        // Predicated region
        $region61: #{tpu_custom_call.1} parent=51 // pred_check
          %p541 = pneg %p141
        $region62: #{tpu_custom_call.1} parent=51 // pred_check_branch
          %543 = sbr.rel (%p541) target = $region64
        $region63: #{tpu_custom_call.1} parent=51 // pred_region
          %545 = dma.done %s537, 256
        $region64: #{tpu_custom_call.1} parent=51 // pred_fallthru
          _
        %s546 = sand.u32 %s34, 1
        %s547 = scalar_lea.sflag [#allocation9], %s546
        %s548 = sand.u32 %s156, 1
        %s549 = smul.addr %s548, 128
        %s550 = scalar_lea.vmem [#allocation8], %s549
        // Predicated region
        $region65: #{tpu_custom_call.1} parent=51 // pred_check
          %p551 = pneg %p169
        $region66: #{tpu_custom_call.1} parent=51 // pred_check_branch
          %553 = sbr.rel (%p551) target = $region68
        $region67: #{tpu_custom_call.1} parent=51 // pred_region
          %555 = dma.done %s547, 2048
        $region68: #{tpu_custom_call.1} parent=51 // pred_fallthru
          _
        %s556 = sand.u32 %s34, 1
        %s557 = scalar_lea.sflag [#allocation9], %s556
        %s558 = sand.u32 %s192, 1
        %s559 = smul.addr %s558, 16
        %s560 = scalar_lea.vmem [#allocation10], %s559
        // Predicated region
        $region69: #{tpu_custom_call.1} parent=51 // pred_check
          %p561 = pneg %p205
        $region70: #{tpu_custom_call.1} parent=51 // pred_check_branch
          %563 = sbr.rel (%p561) target = $region72
        $region71: #{tpu_custom_call.1} parent=51 // pred_region
          %565 = dma.done %s557, 256
        $region72: #{tpu_custom_call.1} parent=51 // pred_fallthru
          _
        %s566 = sand.u32 %s34, 1
        %s567 = scalar_lea.sflag [#allocation12], %s566
        %s568 = sand.u32 %s228, 1
        %s569 = smul.addr %s568, 16
        %s570 = scalar_lea.vmem [#allocation11], %s569
        // Predicated region
        $region73: #{tpu_custom_call.1} parent=51 // pred_check
          %p571 = pneg %p241
        $region74: #{tpu_custom_call.1} parent=51 // pred_check_branch
          %573 = sbr.rel (%p571) target = $region76
        $region75: #{tpu_custom_call.1} parent=51 // pred_region
          %575 = dma.done %s567, 256
        $region76: #{tpu_custom_call.1} parent=51 // pred_fallthru
          _
        // Predicated region
        $region77: #{tpu_custom_call.1} parent=51 // pred_check
          %p576 = pneg %p262
        $region78: #{tpu_custom_call.1} parent=51 // pred_check_branch
          %578 = sbr.rel (%p576) target = $region80
        $region79: #{tpu_custom_call.1} parent=51 // pred_region
          %580 = dma.done [#allocation12], 9216
        $region80: #{tpu_custom_call.1} parent=51 // pred_fallthru
          _
        %s581 = sand.u32 %s56, 1
        %s582 = scalar_lea.sflag [#allocation3], %s581
        %s583 = sand.u32 %s56, 1
        %s584 = smul.addr %s583, 128
        %s585 = scalar_lea.vmem [#allocation2], %s584
        %p586 = pneg %p69
        %p587 = pneg %p66
        %s588 = sand.u32 %s34, 1
        %s589 = scalar_lea.sflag [#allocation6], %s588
        %s590 = sand.u32 %s92, 1
        %s591 = smul.addr %s590, 16
        %s592 = scalar_lea.vmem [#allocation5], %s591
        %p593 = pneg %p105
        %p594 = pneg %p102
        %s595 = sand.u32 %s34, 1
        %s596 = scalar_lea.sflag [#allocation6], %s595
        %s597 = sand.u32 %s128, 1
        %s598 = smul.addr %s597, 16
        %s599 = scalar_lea.vmem [#allocation7], %s598
        %p600 = pneg %p141
        %p601 = pneg %p138
        %s602 = sand.u32 %s34, 1
        %s603 = scalar_lea.sflag [#allocation9], %s602
        %s604 = sand.u32 %s156, 1
        %s605 = smul.addr %s604, 128
        %s606 = scalar_lea.vmem [#allocation8], %s605
        %p607 = pneg %p169
        %p608 = pneg %p166
        %s609 = sand.u32 %s34, 1
        %s610 = scalar_lea.sflag [#allocation9], %s609
        %s611 = sand.u32 %s192, 1
        %s612 = smul.addr %s611, 16
        %s613 = scalar_lea.vmem [#allocation10], %s612
        %p614 = pneg %p205
        %p615 = pneg %p202
        %s616 = sand.u32 %s34, 1
        %s617 = scalar_lea.sflag [#allocation12], %s616
        %s618 = sand.u32 %s228, 1
        %s619 = smul.addr %s618, 16
        %s620 = scalar_lea.vmem [#allocation11], %s619
        %p621 = pneg %p241
        %p622 = pneg %p238
        %p623 = pneg %p262
        %p624 = pneg %p259
        %p625 = pneg %p283
        %p626 = pneg %p280
        %p627 = pneg %p311
        %p628 = pneg %p308
        %s629 = sand.u32 %s298, 1
        %s630 = scalar_lea.sflag [#allocation4], %s629
        %s631 = sand.u32 %s298, 1
        %s632 = smul.addr %s631, 128
        %s633 = scalar_lea.vmem [#allocation14], %s632
        %s634 = smul.u32 8, %s39
        %s635 = smul.u32 %s39, 8
        %s636 = ssub.s32 %s635, 1
        %p637 = scmp.gt.s32.totalorder %s636, 0
        %s638 = scalar_select %p637, %s636, 0
        %s639 = smul.u32 %s39, 8
        %s640 = sadd.s32 %s639, 8
        %p641 = scmp.lt.s32.totalorder %s640, 31
        %s642 = scalar_select %p641, %s640, 31
        %s643 = smul.u32 8, %s39
        %s644 = smul.u32 %s39, 8
        %s645 = ssub.s32 %s644, 1
        %p646 = scmp.gt.s32.totalorder %s645, 0
        %s647 = scalar_select %p646, %s645, 0
        %s648 = smul.u32 %s39, 8
        %s649 = sadd.s32 %s648, 8
        %p650 = scmp.lt.s32.totalorder %s649, 31
        %s651 = scalar_select %p650, %s649, 31
        %s652 = smul.u32 8, %s39
        %v654 = vld [vmem:[%s520] sm:$0xf]
        %v655 = vld [vmem:[%s520 + $0x4] sm:$0xf]
        %v656 = vld [vmem:[%s520 + $0x8] sm:$0xf]
        %v657 = vld [vmem:[%s520 + $0xc] sm:$0xf]
        %v658 = vld [vmem:[%s520 + $0x10] sm:$0xf]
        %v659 = vld [vmem:[%s520 + $0x14] sm:$0xf]
        %v660 = vld [vmem:[%s520 + $0x18] sm:$0xf]
        %v661 = vld [vmem:[%s520 + $0x1c] sm:$0xf]
        %v662 = vld [vmem:[%s520 + $0x20] sm:$0xf]
        %v663 = vld [vmem:[%s520 + $0x24] sm:$0xf]
        %v664 = vld [vmem:[%s520 + $0x28] sm:$0xf]
        %v665 = vld [vmem:[%s520 + $0x2c] sm:$0xf]
        %v666 = vld [vmem:[%s520 + $0x30] sm:$0xf]
        %v667 = vld [vmem:[%s520 + $0x34] sm:$0xf]
        %v668 = vld [vmem:[%s520 + $0x38] sm:$0xf]
        %v669 = vld [vmem:[%s520 + $0x3c] sm:$0xf]
        %v670 = vld [vmem:[%s520 + $0x40] sm:$0xf]
        %v671 = vld [vmem:[%s520 + $0x44] sm:$0xf]
        %v672 = vld [vmem:[%s520 + $0x48] sm:$0xf]
        %v673 = vld [vmem:[%s520 + $0x4c] sm:$0xf]
        %v674 = vld [vmem:[%s520 + $0x50] sm:$0xf]
        %v675 = vld [vmem:[%s520 + $0x54] sm:$0xf]
        %v676 = vld [vmem:[%s520 + $0x58] sm:$0xf]
        %v677 = vld [vmem:[%s520 + $0x5c] sm:$0xf]
        %v678 = vld [vmem:[%s520 + $0x60] sm:$0xf]
        %v679 = vld [vmem:[%s520 + $0x64] sm:$0xf]
        %v680 = vld [vmem:[%s520 + $0x68] sm:$0xf]
        %v681 = vld [vmem:[%s520 + $0x6c] sm:$0xf]
        %v682 = vld [vmem:[%s520 + $0x70] sm:$0xf]
        %v683 = vld [vmem:[%s520 + $0x74] sm:$0xf]
        %v684 = vld [vmem:[%s520 + $0x78] sm:$0xf]
        %v685 = vld [vmem:[%s520 + $0x7c] sm:$0xf]
        %v686 = vld [vmem:[%s550] sm:$0xf]
        %v687 = vld [vmem:[%s550 + $0x4] sm:$0xf]
        %v688 = vld [vmem:[%s550 + $0x8] sm:$0xf]
        %v689 = vld [vmem:[%s550 + $0xc] sm:$0xf]
        %v690 = vld [vmem:[%s550 + $0x10] sm:$0xf]
        %v691 = vld [vmem:[%s550 + $0x14] sm:$0xf]
        %v692 = vld [vmem:[%s550 + $0x18] sm:$0xf]
        %v693 = vld [vmem:[%s550 + $0x1c] sm:$0xf]
        %v694 = vld [vmem:[%s550 + $0x20] sm:$0xf]
        %v695 = vld [vmem:[%s550 + $0x24] sm:$0xf]
        %v696 = vld [vmem:[%s550 + $0x28] sm:$0xf]
        %v697 = vld [vmem:[%s550 + $0x2c] sm:$0xf]
        %v698 = vld [vmem:[%s550 + $0x30] sm:$0xf]
        %v699 = vld [vmem:[%s550 + $0x34] sm:$0xf]
        %v700 = vld [vmem:[%s550 + $0x38] sm:$0xf]
        %v701 = vld [vmem:[%s550 + $0x3c] sm:$0xf]
        %v702 = vld [vmem:[%s550 + $0x40] sm:$0xf]
        %v703 = vld [vmem:[%s550 + $0x44] sm:$0xf]
        %v704 = vld [vmem:[%s550 + $0x48] sm:$0xf]
        %v705 = vld [vmem:[%s550 + $0x4c] sm:$0xf]
        %v706 = vld [vmem:[%s550 + $0x50] sm:$0xf]
        %v707 = vld [vmem:[%s550 + $0x54] sm:$0xf]
        %v708 = vld [vmem:[%s550 + $0x58] sm:$0xf]
        %v709 = vld [vmem:[%s550 + $0x5c] sm:$0xf]
        %v710 = vld [vmem:[%s550 + $0x60] sm:$0xf]
        %v711 = vld [vmem:[%s550 + $0x64] sm:$0xf]
        %v712 = vld [vmem:[%s550 + $0x68] sm:$0xf]
        %v713 = vld [vmem:[%s550 + $0x6c] sm:$0xf]
        %v714 = vld [vmem:[%s550 + $0x70] sm:$0xf]
        %v715 = vld [vmem:[%s550 + $0x74] sm:$0xf]
        %v716 = vld [vmem:[%s550 + $0x78] sm:$0xf]
        %v717 = vld [vmem:[%s550 + $0x7c] sm:$0xf]
        %v718 = vunpack.c.l.bf16 %v654
        %v719 = vunpack.c.l.bf16 %v655
        %v720 = vunpack.c.l.bf16 %v656
        %v721 = vunpack.c.l.bf16 %v657
        %v722 = vunpack.c.l.bf16 %v658
        %v723 = vunpack.c.l.bf16 %v659
        %v724 = vunpack.c.l.bf16 %v660
        %v725 = vunpack.c.l.bf16 %v661
        %v726 = vunpack.c.l.bf16 %v662
        %v727 = vunpack.c.l.bf16 %v663
        %v728 = vunpack.c.l.bf16 %v664
        %v729 = vunpack.c.l.bf16 %v665
        %v730 = vunpack.c.l.bf16 %v666
        %v731 = vunpack.c.l.bf16 %v667
        %v732 = vunpack.c.l.bf16 %v668
        %v733 = vunpack.c.l.bf16 %v669
        %v734 = vunpack.c.l.bf16 %v670
        %v735 = vunpack.c.l.bf16 %v671
        %v736 = vunpack.c.l.bf16 %v672
        %v737 = vunpack.c.l.bf16 %v673
        %v738 = vunpack.c.l.bf16 %v674
        %v739 = vunpack.c.l.bf16 %v675
        %v740 = vunpack.c.l.bf16 %v676
        %v741 = vunpack.c.l.bf16 %v677
        %v742 = vunpack.c.l.bf16 %v678
        %v743 = vunpack.c.l.bf16 %v679
        %v744 = vunpack.c.l.bf16 %v680
        %v745 = vunpack.c.l.bf16 %v681
        %v746 = vunpack.c.l.bf16 %v682
        %v747 = vunpack.c.l.bf16 %v683
        %v748 = vunpack.c.l.bf16 %v684
        %v749 = vunpack.c.l.bf16 %v685
        %v750 = vunpack.c.l.bf16 %v686
        %v751 = vunpack.c.l.bf16 %v687
        %v752 = vunpack.c.l.bf16 %v688
        %v753 = vunpack.c.l.bf16 %v689
        %v754 = vunpack.c.l.bf16 %v690
        %v755 = vunpack.c.l.bf16 %v691
        %v756 = vunpack.c.l.bf16 %v692
        %v757 = vunpack.c.l.bf16 %v693
        %v758 = vunpack.c.l.bf16 %v694
        %v759 = vunpack.c.l.bf16 %v695
        %v760 = vunpack.c.l.bf16 %v696
        %v761 = vunpack.c.l.bf16 %v697
        %v762 = vunpack.c.l.bf16 %v698
        %v763 = vunpack.c.l.bf16 %v699
        %v764 = vunpack.c.l.bf16 %v700
        %v765 = vunpack.c.l.bf16 %v701
        %v766 = vunpack.c.l.bf16 %v702
        %v767 = vunpack.c.l.bf16 %v703
        %v768 = vunpack.c.l.bf16 %v704
        %v769 = vunpack.c.l.bf16 %v705
        %v770 = vunpack.c.l.bf16 %v706
        %v771 = vunpack.c.l.bf16 %v707
        %v772 = vunpack.c.l.bf16 %v708
        %v773 = vunpack.c.l.bf16 %v709
        %v774 = vunpack.c.l.bf16 %v710
        %v775 = vunpack.c.l.bf16 %v711
        %v776 = vunpack.c.l.bf16 %v712
        %v777 = vunpack.c.l.bf16 %v713
        %v778 = vunpack.c.l.bf16 %v714
        %v779 = vunpack.c.l.bf16 %v715
        %v780 = vunpack.c.l.bf16 %v716
        %v781 = vunpack.c.l.bf16 %v717
        %v782 = vadd.f32 %v718, %v750
        %v783 = vadd.f32 %v719, %v751
        %v784 = vadd.f32 %v720, %v752
        %v785 = vadd.f32 %v721, %v753
        %v786 = vadd.f32 %v722, %v754
        %v787 = vadd.f32 %v723, %v755
        %v788 = vadd.f32 %v724, %v756
        %v789 = vadd.f32 %v725, %v757
        %v790 = vadd.f32 %v726, %v758
        %v791 = vadd.f32 %v727, %v759
        %v792 = vadd.f32 %v728, %v760
        %v793 = vadd.f32 %v729, %v761
        %v794 = vadd.f32 %v730, %v762
        %v795 = vadd.f32 %v731, %v763
        %v796 = vadd.f32 %v732, %v764
        %v797 = vadd.f32 %v733, %v765
        %v798 = vadd.f32 %v734, %v766
        %v799 = vadd.f32 %v735, %v767
        %v800 = vadd.f32 %v736, %v768
        %v801 = vadd.f32 %v737, %v769
        %v802 = vadd.f32 %v738, %v770
        %v803 = vadd.f32 %v739, %v771
        %v804 = vadd.f32 %v740, %v772
        %v805 = vadd.f32 %v741, %v773
        %v806 = vadd.f32 %v742, %v774
        %v807 = vadd.f32 %v743, %v775
        %v808 = vadd.f32 %v744, %v776
        %v809 = vadd.f32 %v745, %v777
        %v810 = vadd.f32 %v746, %v778
        %v811 = vadd.f32 %v747, %v779
        %v812 = vadd.f32 %v748, %v780
        %v813 = vadd.f32 %v749, %v781
        %v814 = vpack.c.bf16 %v782, %v782
        %v815 = vpack.c.bf16 %v783, %v783
        %v816 = vpack.c.bf16 %v784, %v784
        %v817 = vpack.c.bf16 %v785, %v785
        %v818 = vpack.c.bf16 %v786, %v786
        %v819 = vpack.c.bf16 %v787, %v787
        %v820 = vpack.c.bf16 %v788, %v788
        %v821 = vpack.c.bf16 %v789, %v789
        %v822 = vpack.c.bf16 %v790, %v790
        %v823 = vpack.c.bf16 %v791, %v791
        %v824 = vpack.c.bf16 %v792, %v792
        %v825 = vpack.c.bf16 %v793, %v793
        %v826 = vpack.c.bf16 %v794, %v794
        %v827 = vpack.c.bf16 %v795, %v795
        %v828 = vpack.c.bf16 %v796, %v796
        %v829 = vpack.c.bf16 %v797, %v797
        %v830 = vpack.c.bf16 %v798, %v798
        %v831 = vpack.c.bf16 %v799, %v799
        %v832 = vpack.c.bf16 %v800, %v800
        %v833 = vpack.c.bf16 %v801, %v801
        %v834 = vpack.c.bf16 %v802, %v802
        %v835 = vpack.c.bf16 %v803, %v803
        %v836 = vpack.c.bf16 %v804, %v804
        %v837 = vpack.c.bf16 %v805, %v805
        %v838 = vpack.c.bf16 %v806, %v806
        %v839 = vpack.c.bf16 %v807, %v807
        %v840 = vpack.c.bf16 %v808, %v808
        %v841 = vpack.c.bf16 %v809, %v809
        %v842 = vpack.c.bf16 %v810, %v810
        %v843 = vpack.c.bf16 %v811, %v811
        %v844 = vpack.c.bf16 %v812, %v812
        %v845 = vpack.c.bf16 %v813, %v813
        %v846 = vunpack.c.l.bf16 %v814
        %v847 = vunpack.c.l.bf16 %v815
        %v848 = vunpack.c.l.bf16 %v816
        %v849 = vunpack.c.l.bf16 %v817
        %v850 = vunpack.c.l.bf16 %v818
        %v851 = vunpack.c.l.bf16 %v819
        %v852 = vunpack.c.l.bf16 %v820
        %v853 = vunpack.c.l.bf16 %v821
        %v854 = vunpack.c.l.bf16 %v822
        %v855 = vunpack.c.l.bf16 %v823
        %v856 = vunpack.c.l.bf16 %v824
        %v857 = vunpack.c.l.bf16 %v825
        %v858 = vunpack.c.l.bf16 %v826
        %v859 = vunpack.c.l.bf16 %v827
        %v860 = vunpack.c.l.bf16 %v828
        %v861 = vunpack.c.l.bf16 %v829
        %v862 = vunpack.c.l.bf16 %v830
        %v863 = vunpack.c.l.bf16 %v831
        %v864 = vunpack.c.l.bf16 %v832
        %v865 = vunpack.c.l.bf16 %v833
        %v866 = vunpack.c.l.bf16 %v834
        %v867 = vunpack.c.l.bf16 %v835
        %v868 = vunpack.c.l.bf16 %v836
        %v869 = vunpack.c.l.bf16 %v837
        %v870 = vunpack.c.l.bf16 %v838
        %v871 = vunpack.c.l.bf16 %v839
        %v872 = vunpack.c.l.bf16 %v840
        %v873 = vunpack.c.l.bf16 %v841
        %v874 = vunpack.c.l.bf16 %v842
        %v875 = vunpack.c.l.bf16 %v843
        %v876 = vunpack.c.l.bf16 %v844
        %v877 = vunpack.c.l.bf16 %v845
        %v878 = vmax.f32 %v846, 0.0
        %v879 = vmax.f32 %v847, 0.0
        %v880 = vmax.f32 %v848, 0.0
        %v881 = vmax.f32 %v849, 0.0
        %v882 = vmax.f32 %v850, 0.0
        %v883 = vmax.f32 %v851, 0.0
        %v884 = vmax.f32 %v852, 0.0
        %v885 = vmax.f32 %v853, 0.0
        %v886 = vmax.f32 %v854, 0.0
        %v887 = vmax.f32 %v855, 0.0
        %v888 = vmax.f32 %v856, 0.0
        %v889 = vmax.f32 %v857, 0.0
        %v890 = vmax.f32 %v858, 0.0
        %v891 = vmax.f32 %v859, 0.0
        %v892 = vmax.f32 %v860, 0.0
        %v893 = vmax.f32 %v861, 0.0
        %v894 = vmax.f32 %v862, 0.0
        %v895 = vmax.f32 %v863, 0.0
        %v896 = vmax.f32 %v864, 0.0
        %v897 = vmax.f32 %v865, 0.0
        %v898 = vmax.f32 %v866, 0.0
        %v899 = vmax.f32 %v867, 0.0
        %v900 = vmax.f32 %v868, 0.0
        %v901 = vmax.f32 %v869, 0.0
        %v902 = vmax.f32 %v870, 0.0
        %v903 = vmax.f32 %v871, 0.0
        %v904 = vmax.f32 %v872, 0.0
        %v905 = vmax.f32 %v873, 0.0
        %v906 = vmax.f32 %v874, 0.0
        %v907 = vmax.f32 %v875, 0.0
        %v908 = vmax.f32 %v876, 0.0
        %v909 = vmax.f32 %v877, 0.0
        %v910 = vpack.c.bf16 %v878, %v878
        %v911 = vpack.c.bf16 %v879, %v879
        %v912 = vpack.c.bf16 %v880, %v880
        %v913 = vpack.c.bf16 %v881, %v881
        %v914 = vpack.c.bf16 %v882, %v882
        %v915 = vpack.c.bf16 %v883, %v883
        %v916 = vpack.c.bf16 %v884, %v884
        %v917 = vpack.c.bf16 %v885, %v885
        %v918 = vpack.c.bf16 %v886, %v886
        %v919 = vpack.c.bf16 %v887, %v887
        %v920 = vpack.c.bf16 %v888, %v888
        %v921 = vpack.c.bf16 %v889, %v889
        %v922 = vpack.c.bf16 %v890, %v890
        %v923 = vpack.c.bf16 %v891, %v891
        %v924 = vpack.c.bf16 %v892, %v892
        %v925 = vpack.c.bf16 %v893, %v893
        %v926 = vpack.c.bf16 %v894, %v894
        %v927 = vpack.c.bf16 %v895, %v895
        %v928 = vpack.c.bf16 %v896, %v896
        %v929 = vpack.c.bf16 %v897, %v897
        %v930 = vpack.c.bf16 %v898, %v898
        %v931 = vpack.c.bf16 %v899, %v899
        %v932 = vpack.c.bf16 %v900, %v900
        %v933 = vpack.c.bf16 %v901, %v901
        %v934 = vpack.c.bf16 %v902, %v902
        %v935 = vpack.c.bf16 %v903, %v903
        %v936 = vpack.c.bf16 %v904, %v904
        %v937 = vpack.c.bf16 %v905, %v905
        %v938 = vpack.c.bf16 %v906, %v906
        %v939 = vpack.c.bf16 %v907, %v907
        %v940 = vpack.c.bf16 %v908, %v908
        %v941 = vpack.c.bf16 %v909, %v909
        %v942 = vld [vmem:[%s530] sm:$0xf]
        %v943 = vld [vmem:[%s530 + $0x4] sm:$0xf]
        %v944 = vld [vmem:[%s530 + $0x8] sm:$0xf]
        %v945 = vld [vmem:[%s530 + $0xc] sm:$0xf]
        %v946 = vld [vmem:[%s560] sm:$0xf]
        %v947 = vld [vmem:[%s560 + $0x4] sm:$0xf]
        %v948 = vld [vmem:[%s560 + $0x8] sm:$0xf]
        %v949 = vld [vmem:[%s560 + $0xc] sm:$0xf]
        %v950 = vunpack.c.l.bf16 %v942
        %v951 = vunpack.c.l.bf16 %v943
        %v952 = vunpack.c.l.bf16 %v944
        %v953 = vunpack.c.l.bf16 %v945
        %v954 = vunpack.c.l.bf16 %v946
        %v955 = vunpack.c.l.bf16 %v947
        %v956 = vunpack.c.l.bf16 %v948
        %v957 = vunpack.c.l.bf16 %v949
        %v958 = vadd.f32 %v950, %v954
        %v959 = vadd.f32 %v951, %v955
        %v960 = vadd.f32 %v952, %v956
        %v961 = vadd.f32 %v953, %v957
        %v962 = vpack.c.bf16 %v958, %v958
        %v963 = vpack.c.bf16 %v959, %v959
        %v964 = vpack.c.bf16 %v960, %v960
        %v965 = vpack.c.bf16 %v961, %v961
        %v966 = vunpack.c.l.bf16 %v962
        %v967 = vunpack.c.l.bf16 %v963
        %v968 = vunpack.c.l.bf16 %v964
        %v969 = vunpack.c.l.bf16 %v965
        %v970 = vmax.f32 %v966, 0.0
        %v971 = vmax.f32 %v967, 0.0
        %v972 = vmax.f32 %v968, 0.0
        %v973 = vmax.f32 %v969, 0.0
        %v974 = vpack.c.bf16 %v970, %v970
        %v975 = vpack.c.bf16 %v971, %v971
        %v976 = vpack.c.bf16 %v972, %v972
        %v977 = vpack.c.bf16 %v973, %v973
        %v978 = vld [vmem:[%s540] sm:$0xf]
        %v979 = vld [vmem:[%s540 + $0x4] sm:$0xf]
        %v980 = vld [vmem:[%s540 + $0x8] sm:$0xf]
        %v981 = vld [vmem:[%s540 + $0xc] sm:$0xf]
        %v982 = vld [vmem:[%s570] sm:$0xf]
        %v983 = vld [vmem:[%s570 + $0x4] sm:$0xf]
        %v984 = vld [vmem:[%s570 + $0x8] sm:$0xf]
        %v985 = vld [vmem:[%s570 + $0xc] sm:$0xf]
        %v986 = vunpack.c.l.bf16 %v978
        %v987 = vunpack.c.l.bf16 %v979
        %v988 = vunpack.c.l.bf16 %v980
        %v989 = vunpack.c.l.bf16 %v981
        %v990 = vunpack.c.l.bf16 %v982
        %v991 = vunpack.c.l.bf16 %v983
        %v992 = vunpack.c.l.bf16 %v984
        %v993 = vunpack.c.l.bf16 %v985
        %v994 = vadd.f32 %v986, %v990
        %v995 = vadd.f32 %v987, %v991
        %v996 = vadd.f32 %v988, %v992
        %v997 = vadd.f32 %v989, %v993
        %v998 = vpack.c.bf16 %v994, %v994
        %v999 = vpack.c.bf16 %v995, %v995
        %v1000 = vpack.c.bf16 %v996, %v996
        %v1001 = vpack.c.bf16 %v997, %v997
        %v1002 = vunpack.c.l.bf16 %v998
        %v1003 = vunpack.c.l.bf16 %v999
        %v1004 = vunpack.c.l.bf16 %v1000
        %v1005 = vunpack.c.l.bf16 %v1001
        %v1006 = vmax.f32 %v1002, 0.0
        %v1007 = vmax.f32 %v1003, 0.0
        %v1008 = vmax.f32 %v1004, 0.0
        %v1009 = vmax.f32 %v1005, 0.0
        %v1010 = vpack.c.bf16 %v1006, %v1006
        %v1011 = vpack.c.bf16 %v1007, %v1007
        %v1012 = vpack.c.bf16 %v1008, %v1008
        %v1013 = vpack.c.bf16 %v1009, %v1009
        %p1014 = scmp.eq.s32.totalorder %s39, 0
        %s1015 = scalar_select %p1014, 1, 0
        %v1016 = vstv %s1015
        %vm1017 = vcmp.eq.s32.totalorder %v1016, 1
        %v1018 = vsel %vm1017, 0, %v974
        %v1019 = vsel %vm1017, 0, %v975
        %v1020 = vsel %vm1017, 0, %v976
        %v1021 = vsel %vm1017, 0, %v977
        %p1022 = scmp.eq.s32.totalorder %s39, 3
        %s1023 = scalar_select %p1022, 1, 0
        %v1024 = vstv %s1023
        %vm1025 = vcmp.eq.s32.totalorder %v1024, 1
        %v1026 = vsel %vm1025, 0, %v1010
        %v1027 = vsel %vm1025, 0, %v1011
        %v1028 = vsel %vm1025, 0, %v1012
        %v1029 = vsel %vm1025, 0, %v1013
        %v1070 = vunpack.c.l.b16 %v1018
        %v1071 = vunpack.c.l.b16 %v1019
        %v1072 = vunpack.c.l.b16 %v1020
        %v1073 = vunpack.c.l.b16 %v1021
        %v1074 = vunpack.c.l.b16 %v910
        %v1075 = vunpack.c.l.b16 %v911
        %v1076 = vunpack.c.l.b16 %v912
        %v1077 = vunpack.c.l.b16 %v913
        %v1078 = vunpack.c.l.b16 %v914
        %v1079 = vunpack.c.l.b16 %v915
        %v1080 = vunpack.c.l.b16 %v916
        %v1081 = vunpack.c.l.b16 %v917
        %v1082 = vunpack.c.l.b16 %v918
        %v1083 = vunpack.c.l.b16 %v919
        %v1084 = vunpack.c.l.b16 %v920
        %v1085 = vunpack.c.l.b16 %v921
        %v1086 = vunpack.c.l.b16 %v922
        %v1087 = vunpack.c.l.b16 %v923
        %v1088 = vunpack.c.l.b16 %v924
        %v1089 = vunpack.c.l.b16 %v925
        %v1090 = vunpack.c.l.b16 %v926
        %v1091 = vunpack.c.l.b16 %v927
        %v1092 = vunpack.c.l.b16 %v928
        %v1093 = vunpack.c.l.b16 %v929
        %v1094 = vunpack.c.l.b16 %v930
        %v1095 = vunpack.c.l.b16 %v931
        %v1096 = vunpack.c.l.b16 %v932
        %v1097 = vunpack.c.l.b16 %v933
        %v1098 = vunpack.c.l.b16 %v934
        %v1099 = vunpack.c.l.b16 %v935
        %v1100 = vunpack.c.l.b16 %v936
        %v1101 = vunpack.c.l.b16 %v937
        %v1102 = vunpack.c.l.b16 %v938
        %v1103 = vunpack.c.l.b16 %v939
        %v1104 = vunpack.c.l.b16 %v940
        %v1105 = vunpack.c.l.b16 %v941
        %v1106 = vunpack.c.l.b16 %v1026
        %v1107 = vunpack.c.l.b16 %v1027
        %v1108 = vunpack.c.l.b16 %v1028
        %v1109 = vunpack.c.l.b16 %v1029
        %v1110 = vpack.c.b16 %v1071, %v1070
        %v1111 = vpack.c.b16 %v1073, %v1072
        %v1112 = vpack.c.b16 %v1075, %v1074
        %v1113 = vpack.c.b16 %v1077, %v1076
        %v1114 = vpack.c.b16 %v1079, %v1078
        %v1115 = vpack.c.b16 %v1081, %v1080
        %v1116 = vpack.c.b16 %v1083, %v1082
        %v1117 = vpack.c.b16 %v1085, %v1084
        %v1118 = vpack.c.b16 %v1087, %v1086
        %v1119 = vpack.c.b16 %v1089, %v1088
        %v1120 = vpack.c.b16 %v1091, %v1090
        %v1121 = vpack.c.b16 %v1093, %v1092
        %v1122 = vpack.c.b16 %v1095, %v1094
        %v1123 = vpack.c.b16 %v1097, %v1096
        %v1124 = vpack.c.b16 %v1099, %v1098
        %v1125 = vpack.c.b16 %v1101, %v1100
        %v1126 = vpack.c.b16 %v1103, %v1102
        %v1127 = vpack.c.b16 %v1105, %v1104
        %v1128 = vpack.c.b16 %v1107, %v1106
        %v1129 = vpack.c.b16 %v1109, %v1108
        %vm1130 = vsmask.f32 256
        %v1132 = vshrl.u32 %v1110, 16
        %v1134 = vrot.slane %v1132, 7
        %v1135 = vshll.u32 %v1110, 16
        %v1137 = vor.u32 %v1134, %v1135
        %v1139 = vshrl.u32 %v1111, 16
        %v1141 = vrot.slane %v1139, 7
        %v1142 = vshll.u32 %v1111, 16
        %v1144 = vor.u32 %v1141, %v1142
        %v1145 = vsel %vm1130, %v1134, %v1144
        %v1147 = vshrl.u32 %v1112, 16
        %v1149 = vrot.slane %v1147, 7
        %v1150 = vshll.u32 %v1112, 16
        %v1152 = vor.u32 %v1149, %v1150
        %v1154 = vshrl.u32 %v1113, 16
        %v1156 = vrot.slane %v1154, 7
        %v1157 = vshll.u32 %v1113, 16
        %v1159 = vor.u32 %v1156, %v1157
        %v1160 = vsel %vm1130, %v1149, %v1159
        %v1162 = vshrl.u32 %v1114, 16
        %v1164 = vrot.slane %v1162, 7
        %v1165 = vshll.u32 %v1114, 16
        %v1167 = vor.u32 %v1164, %v1165
        %v1169 = vshrl.u32 %v1115, 16
        %v1171 = vrot.slane %v1169, 7
        %v1172 = vshll.u32 %v1115, 16
        %v1174 = vor.u32 %v1171, %v1172
        %v1175 = vsel %vm1130, %v1164, %v1174
        %v1177 = vshrl.u32 %v1116, 16
        %v1179 = vrot.slane %v1177, 7
        %v1180 = vshll.u32 %v1116, 16
        %v1182 = vor.u32 %v1179, %v1180
        %v1184 = vshrl.u32 %v1117, 16
        %v1186 = vrot.slane %v1184, 7
        %v1187 = vshll.u32 %v1117, 16
        %v1189 = vor.u32 %v1186, %v1187
        %v1190 = vsel %vm1130, %v1179, %v1189
        %v1192 = vshrl.u32 %v1118, 16
        %v1194 = vrot.slane %v1192, 7
        %v1195 = vshll.u32 %v1118, 16
        %v1197 = vor.u32 %v1194, %v1195
        %v1199 = vshrl.u32 %v1119, 16
        %v1201 = vrot.slane %v1199, 7
        %v1202 = vshll.u32 %v1119, 16
        %v1204 = vor.u32 %v1201, %v1202
        %v1205 = vsel %vm1130, %v1194, %v1204
        %v1207 = vshrl.u32 %v1120, 16
        %v1209 = vrot.slane %v1207, 7
        %v1210 = vshll.u32 %v1120, 16
        %v1212 = vor.u32 %v1209, %v1210
        %v1214 = vshrl.u32 %v1121, 16
        %v1216 = vrot.slane %v1214, 7
        %v1217 = vshll.u32 %v1121, 16
        %v1219 = vor.u32 %v1216, %v1217
        %v1220 = vsel %vm1130, %v1209, %v1219
        %v1222 = vshrl.u32 %v1122, 16
        %v1224 = vrot.slane %v1222, 7
        %v1225 = vshll.u32 %v1122, 16
        %v1227 = vor.u32 %v1224, %v1225
        %v1229 = vshrl.u32 %v1123, 16
        %v1231 = vrot.slane %v1229, 7
        %v1232 = vshll.u32 %v1123, 16
        %v1234 = vor.u32 %v1231, %v1232
        %v1235 = vsel %vm1130, %v1224, %v1234
        %v1237 = vshrl.u32 %v1124, 16
        %v1239 = vrot.slane %v1237, 7
        %v1240 = vshll.u32 %v1124, 16
        %v1242 = vor.u32 %v1239, %v1240
        %v1244 = vshrl.u32 %v1125, 16
        %v1246 = vrot.slane %v1244, 7
        %v1247 = vshll.u32 %v1125, 16
        %v1249 = vor.u32 %v1246, %v1247
        %v1250 = vsel %vm1130, %v1239, %v1249
        %v1252 = vshrl.u32 %v1126, 16
        %v1254 = vrot.slane %v1252, 7
        %v1255 = vshll.u32 %v1126, 16
        %v1257 = vor.u32 %v1254, %v1255
        %v1259 = vshrl.u32 %v1127, 16
        %v1261 = vrot.slane %v1259, 7
        %v1262 = vshll.u32 %v1127, 16
        %v1264 = vor.u32 %v1261, %v1262
        %v1265 = vsel %vm1130, %v1254, %v1264
        %v1267 = vshrl.u32 %v1128, 16
        %v1269 = vrot.slane %v1267, 7
        %v1270 = vshll.u32 %v1128, 16
        %v1272 = vor.u32 %v1269, %v1270
        %v1274 = vshrl.u32 %v1129, 16
        %v1276 = vrot.slane %v1274, 7
        %v1277 = vshll.u32 %v1129, 16
        %v1279 = vor.u32 %v1276, %v1277
        %v1280 = vsel %vm1130, %v1269, %v1279
        %vm1301 = vcmask 1040384
        %vm1302 = vmand %vm1301, %vm1130
        %v1303 = vsel %vm1302, 0, %v1137
        %v1304 = vsel %vm1302, 0, %v1152
        %v1305 = vsel %vm1302, 0, %v1167
        %v1306 = vsel %vm1302, 0, %v1182
        %v1307 = vsel %vm1302, 0, %v1197
        %v1308 = vsel %vm1302, 0, %v1212
        %v1309 = vsel %vm1302, 0, %v1227
        %v1310 = vsel %vm1302, 0, %v1242
        %v1311 = vsel %vm1302, 0, %v1257
        %v1312 = vsel %vm1302, 0, %v1272
        %vm1313 = vsmask.f32 7424
        %v1314 = vrot.slane %v1135, 1
        %v1315 = vor.u32 %v1132, %v1314
        %v1316 = vrot.slane %v1142, 1
        %v1317 = vsel %vm1313, %v1315, %v1316
        %v1318 = vor.u32 %v1139, %v1316
        %v1319 = vrot.slane %v1150, 1
        %v1320 = vor.u32 %v1147, %v1319
        %v1321 = vrot.slane %v1157, 1
        %v1322 = vsel %vm1313, %v1320, %v1321
        %v1323 = vor.u32 %v1154, %v1321
        %v1324 = vrot.slane %v1165, 1
        %v1325 = vor.u32 %v1162, %v1324
        %v1326 = vrot.slane %v1172, 1
        %v1327 = vsel %vm1313, %v1325, %v1326
        %v1328 = vor.u32 %v1169, %v1326
        %v1329 = vrot.slane %v1180, 1
        %v1330 = vor.u32 %v1177, %v1329
        %v1331 = vrot.slane %v1187, 1
        %v1332 = vsel %vm1313, %v1330, %v1331
        %v1333 = vor.u32 %v1184, %v1331
        %v1334 = vrot.slane %v1195, 1
        %v1335 = vor.u32 %v1192, %v1334
        %v1336 = vrot.slane %v1202, 1
        %v1337 = vsel %vm1313, %v1335, %v1336
        %v1338 = vor.u32 %v1199, %v1336
        %v1339 = vrot.slane %v1210, 1
        %v1340 = vor.u32 %v1207, %v1339
        %v1341 = vrot.slane %v1217, 1
        %v1342 = vsel %vm1313, %v1340, %v1341
        %v1343 = vor.u32 %v1214, %v1341
        %v1344 = vrot.slane %v1225, 1
        %v1345 = vor.u32 %v1222, %v1344
        %v1346 = vrot.slane %v1232, 1
        %v1347 = vsel %vm1313, %v1345, %v1346
        %v1348 = vor.u32 %v1229, %v1346
        %v1349 = vrot.slane %v1240, 1
        %v1350 = vor.u32 %v1237, %v1349
        %v1351 = vrot.slane %v1247, 1
        %v1352 = vsel %vm1313, %v1350, %v1351
        %v1353 = vor.u32 %v1244, %v1351
        %v1354 = vrot.slane %v1255, 1
        %v1355 = vor.u32 %v1252, %v1354
        %v1356 = vrot.slane %v1262, 1
        %v1357 = vsel %vm1313, %v1355, %v1356
        %v1358 = vor.u32 %v1259, %v1356
        %v1359 = vrot.slane %v1270, 1
        %v1360 = vor.u32 %v1267, %v1359
        %v1361 = vrot.slane %v1277, 1
        %v1362 = vsel %vm1313, %v1360, %v1361
        %v1363 = vor.u32 %v1274, %v1361
        %vm1384 = vcmask 1047552
        %vm1385 = vmand %vm1384, %vm1313
        %v1386 = vsel %vm1385, %v1318, 0
        %v1387 = vsel %vm1385, %v1323, 0
        %v1388 = vsel %vm1385, %v1328, 0
        %v1389 = vsel %vm1385, %v1333, 0
        %v1390 = vsel %vm1385, %v1338, 0
        %v1391 = vsel %vm1385, %v1343, 0
        %v1392 = vsel %vm1385, %v1348, 0
        %v1393 = vsel %vm1385, %v1353, 0
        %v1394 = vsel %vm1385, %v1358, 0
        %v1395 = vsel %vm1385, %v1363, 0
        %v1416 = vld [vmem:[#allocation13] sm:$0xf]
        %v1417 = vld [vmem:[#allocation13 + $0x4] sm:$0xf]
        %v1418 = vld [vmem:[#allocation13 + $0x8] sm:$0xf]
        %v1419 = vld [vmem:[#allocation13 + $0xc] sm:$0xf]
        %v1420 = vld [vmem:[#allocation13 + $0x10] sm:$0xf]
        %v1421 = vld [vmem:[#allocation13 + $0x14] sm:$0xf]
        %v1422 = vld [vmem:[#allocation13 + $0x18] sm:$0xf]
        %v1423 = vld [vmem:[#allocation13 + $0x1c] sm:$0xf]
        %v1424 = vld [vmem:[#allocation13 + $0x20] sm:$0xf]
        %v1425 = vld [vmem:[#allocation13 + $0x24] sm:$0xf]
        %v1426 = vld [vmem:[#allocation13 + $0x28] sm:$0xf]
        %v1427 = vld [vmem:[#allocation13 + $0x2c] sm:$0xf]
        %v1428 = vld [vmem:[#allocation13 + $0x30] sm:$0xf]
        %v1429 = vld [vmem:[#allocation13 + $0x34] sm:$0xf]
        %v1430 = vld [vmem:[#allocation13 + $0x38] sm:$0xf]
        %v1431 = vld [vmem:[#allocation13 + $0x3c] sm:$0xf]
        %v1432 = vld [vmem:[#allocation13 + $0x40] sm:$0xf]
        %v1433 = vld [vmem:[#allocation13 + $0x44] sm:$0xf]
        %v1434 = vld [vmem:[#allocation13 + $0x48] sm:$0xf]
        %v1435 = vld [vmem:[#allocation13 + $0x4c] sm:$0xf]
        %v1436 = vld [vmem:[#allocation13 + $0x50] sm:$0xf]
        %v1437 = vld [vmem:[#allocation13 + $0x54] sm:$0xf]
        %v1438 = vld [vmem:[#allocation13 + $0x58] sm:$0xf]
        %v1439 = vld [vmem:[#allocation13 + $0x5c] sm:$0xf]
        %v1440 = vld [vmem:[#allocation13 + $0x60] sm:$0xf]
        %v1441 = vld [vmem:[#allocation13 + $0x64] sm:$0xf]
        %v1442 = vld [vmem:[#allocation13 + $0x68] sm:$0xf]
        %v1443 = vld [vmem:[#allocation13 + $0x6c] sm:$0xf]
        %v1444 = vld [vmem:[#allocation13 + $0x70] sm:$0xf]
        %v1445 = vld [vmem:[#allocation13 + $0x74] sm:$0xf]
        %v1446 = vld [vmem:[#allocation13 + $0x78] sm:$0xf]
        %v1447 = vld [vmem:[#allocation13 + $0x7c] sm:$0xf]
        %v1448 = vld [vmem:[#allocation13 + $0x80] sm:$0xf]
        %v1449 = vld [vmem:[#allocation13 + $0x84] sm:$0xf]
        %v1450 = vld [vmem:[#allocation13 + $0x88] sm:$0xf]
        %v1451 = vld [vmem:[#allocation13 + $0x8c] sm:$0xf]
        %v1452 = vld [vmem:[#allocation13 + $0x90] sm:$0xf]
        %v1453 = vld [vmem:[#allocation13 + $0x94] sm:$0xf]
        %v1454 = vld [vmem:[#allocation13 + $0x98] sm:$0xf]
        %v1455 = vld [vmem:[#allocation13 + $0x9c] sm:$0xf]
        %v1456 = vld [vmem:[#allocation13 + $0xa0] sm:$0xf]
        %v1457 = vld [vmem:[#allocation13 + $0xa4] sm:$0xf]
        %v1458 = vld [vmem:[#allocation13 + $0xa8] sm:$0xf]
        %v1459 = vld [vmem:[#allocation13 + $0xac] sm:$0xf]
        %v1460 = vld [vmem:[#allocation13 + $0xb0] sm:$0xf]
        %v1461 = vld [vmem:[#allocation13 + $0xb4] sm:$0xf]
        %v1462 = vld [vmem:[#allocation13 + $0xb8] sm:$0xf]
        %v1463 = vld [vmem:[#allocation13 + $0xbc] sm:$0xf]
        %v1464 = vld [vmem:[#allocation13 + $0xc0] sm:$0xf]
        %v1465 = vld [vmem:[#allocation13 + $0xc4] sm:$0xf]
        %v1466 = vld [vmem:[#allocation13 + $0xc8] sm:$0xf]
        %v1467 = vld [vmem:[#allocation13 + $0xcc] sm:$0xf]
        %v1468 = vld [vmem:[#allocation13 + $0xd0] sm:$0xf]
        %v1469 = vld [vmem:[#allocation13 + $0xd4] sm:$0xf]
        %v1470 = vld [vmem:[#allocation13 + $0xd8] sm:$0xf]
        %v1471 = vld [vmem:[#allocation13 + $0xdc] sm:$0xf]
        %v1472 = vld [vmem:[#allocation13 + $0xe0] sm:$0xf]
        %v1473 = vld [vmem:[#allocation13 + $0xe4] sm:$0xf]
        %v1474 = vld [vmem:[#allocation13 + $0xe8] sm:$0xf]
        %v1475 = vld [vmem:[#allocation13 + $0xec] sm:$0xf]
        %v1476 = vld [vmem:[#allocation13 + $0xf0] sm:$0xf]
        %v1477 = vld [vmem:[#allocation13 + $0xf4] sm:$0xf]
        %v1478 = vld [vmem:[#allocation13 + $0xf8] sm:$0xf]
        %v1479 = vld [vmem:[#allocation13 + $0xfc] sm:$0xf]
        %v1480 = vld [vmem:[#allocation13 + $0x100] sm:$0xf]
        %v1481 = vld [vmem:[#allocation13 + $0x104] sm:$0xf]
        %v1482 = vld [vmem:[#allocation13 + $0x108] sm:$0xf]
        %v1483 = vld [vmem:[#allocation13 + $0x10c] sm:$0xf]
        %v1484 = vld [vmem:[#allocation13 + $0x110] sm:$0xf]
        %v1485 = vld [vmem:[#allocation13 + $0x114] sm:$0xf]
        %v1486 = vld [vmem:[#allocation13 + $0x118] sm:$0xf]
        %v1487 = vld [vmem:[#allocation13 + $0x11c] sm:$0xf]
        %v1488 = vld [vmem:[#allocation13 + $0x120] sm:$0xf]
        %v1489 = vld [vmem:[#allocation13 + $0x124] sm:$0xf]
        %v1490 = vld [vmem:[#allocation13 + $0x128] sm:$0xf]
        %v1491 = vld [vmem:[#allocation13 + $0x12c] sm:$0xf]
        %v1492 = vld [vmem:[#allocation13 + $0x130] sm:$0xf]
        %v1493 = vld [vmem:[#allocation13 + $0x134] sm:$0xf]
        %v1494 = vld [vmem:[#allocation13 + $0x138] sm:$0xf]
        %v1495 = vld [vmem:[#allocation13 + $0x13c] sm:$0xf]
        %v1496 = vld [vmem:[#allocation13 + $0x140] sm:$0xf]
        %v1497 = vld [vmem:[#allocation13 + $0x144] sm:$0xf]
        %v1498 = vld [vmem:[#allocation13 + $0x148] sm:$0xf]
        %v1499 = vld [vmem:[#allocation13 + $0x14c] sm:$0xf]
        %v1500 = vld [vmem:[#allocation13 + $0x150] sm:$0xf]
        %v1501 = vld [vmem:[#allocation13 + $0x154] sm:$0xf]
        %v1502 = vld [vmem:[#allocation13 + $0x158] sm:$0xf]
        %v1503 = vld [vmem:[#allocation13 + $0x15c] sm:$0xf]
        %v1504 = vld [vmem:[#allocation13 + $0x160] sm:$0xf]
        %v1505 = vld [vmem:[#allocation13 + $0x164] sm:$0xf]
        %v1506 = vld [vmem:[#allocation13 + $0x168] sm:$0xf]
        %v1507 = vld [vmem:[#allocation13 + $0x16c] sm:$0xf]
        %v1508 = vld [vmem:[#allocation13 + $0x170] sm:$0xf]
        %v1509 = vld [vmem:[#allocation13 + $0x174] sm:$0xf]
        %v1510 = vld [vmem:[#allocation13 + $0x178] sm:$0xf]
        %v1511 = vld [vmem:[#allocation13 + $0x17c] sm:$0xf]
        %v1512 = vld [vmem:[#allocation13 + $0x180] sm:$0xf]
        %v1513 = vld [vmem:[#allocation13 + $0x184] sm:$0xf]
        %v1514 = vld [vmem:[#allocation13 + $0x188] sm:$0xf]
        %v1515 = vld [vmem:[#allocation13 + $0x18c] sm:$0xf]
        %v1516 = vld [vmem:[#allocation13 + $0x190] sm:$0xf]
        %v1517 = vld [vmem:[#allocation13 + $0x194] sm:$0xf]
        %v1518 = vld [vmem:[#allocation13 + $0x198] sm:$0xf]
        %v1519 = vld [vmem:[#allocation13 + $0x19c] sm:$0xf]
        %v1520 = vld [vmem:[#allocation13 + $0x1a0] sm:$0xf]
        %v1521 = vld [vmem:[#allocation13 + $0x1a4] sm:$0xf]
        %v1522 = vld [vmem:[#allocation13 + $0x1a8] sm:$0xf]
        %v1523 = vld [vmem:[#allocation13 + $0x1ac] sm:$0xf]
        %v1524 = vld [vmem:[#allocation13 + $0x1b0] sm:$0xf]
        %v1525 = vld [vmem:[#allocation13 + $0x1b4] sm:$0xf]
        %v1526 = vld [vmem:[#allocation13 + $0x1b8] sm:$0xf]
        %v1527 = vld [vmem:[#allocation13 + $0x1bc] sm:$0xf]
        %v1528 = vld [vmem:[#allocation13 + $0x1c0] sm:$0xf]
        %v1529 = vld [vmem:[#allocation13 + $0x1c4] sm:$0xf]
        %v1530 = vld [vmem:[#allocation13 + $0x1c8] sm:$0xf]
        %v1531 = vld [vmem:[#allocation13 + $0x1cc] sm:$0xf]
        %v1532 = vld [vmem:[#allocation13 + $0x1d0] sm:$0xf]
        %v1533 = vld [vmem:[#allocation13 + $0x1d4] sm:$0xf]
        %v1534 = vld [vmem:[#allocation13 + $0x1d8] sm:$0xf]
        %v1535 = vld [vmem:[#allocation13 + $0x1dc] sm:$0xf]
        %v1536 = vld [vmem:[#allocation13 + $0x1e0] sm:$0xf]
        %v1537 = vld [vmem:[#allocation13 + $0x1e4] sm:$0xf]
        %v1538 = vld [vmem:[#allocation13 + $0x1e8] sm:$0xf]
        %v1539 = vld [vmem:[#allocation13 + $0x1ec] sm:$0xf]
        %v1540 = vld [vmem:[#allocation13 + $0x1f0] sm:$0xf]
        %v1541 = vld [vmem:[#allocation13 + $0x1f4] sm:$0xf]
        %v1542 = vld [vmem:[#allocation13 + $0x1f8] sm:$0xf]
        %v1543 = vld [vmem:[#allocation13 + $0x1fc] sm:$0xf]
        %v1544 = vld [vmem:[#allocation13 + $0x200] sm:$0xf]
        %v1545 = vld [vmem:[#allocation13 + $0x204] sm:$0xf]
        %v1546 = vld [vmem:[#allocation13 + $0x208] sm:$0xf]
        %v1547 = vld [vmem:[#allocation13 + $0x20c] sm:$0xf]
        %v1548 = vld [vmem:[#allocation13 + $0x210] sm:$0xf]
        %v1549 = vld [vmem:[#allocation13 + $0x214] sm:$0xf]
        %v1550 = vld [vmem:[#allocation13 + $0x218] sm:$0xf]
        %v1551 = vld [vmem:[#allocation13 + $0x21c] sm:$0xf]
        %v1552 = vld [vmem:[#allocation13 + $0x220] sm:$0xf]
        %v1553 = vld [vmem:[#allocation13 + $0x224] sm:$0xf]
        %v1554 = vld [vmem:[#allocation13 + $0x228] sm:$0xf]
        %v1555 = vld [vmem:[#allocation13 + $0x22c] sm:$0xf]
        %v1556 = vld [vmem:[#allocation13 + $0x230] sm:$0xf]
        %v1557 = vld [vmem:[#allocation13 + $0x234] sm:$0xf]
        %v1558 = vld [vmem:[#allocation13 + $0x238] sm:$0xf]
        %v1559 = vld [vmem:[#allocation13 + $0x23c] sm:$0xf]
        %v1560 = vld [vmem:[%s7] sm:$0x1]
        %v1562 = vperm.slane %v1560, 0
        %v1708 = vunpack.c.l.b16 %v1416
        %v1709 = vunpack.c.l.b16 %v1417
        %v1710 = vunpack.c.l.b16 %v1418
        %v1711 = vunpack.c.l.b16 %v1419
        %v1712 = vunpack.c.l.b16 %v1420
        %v1713 = vunpack.c.l.b16 %v1421
        %v1714 = vunpack.c.l.b16 %v1422
        %v1715 = vunpack.c.l.b16 %v1423
        %v1716 = vunpack.c.l.b16 %v1424
        %v1717 = vunpack.c.l.b16 %v1425
        %v1718 = vunpack.c.l.b16 %v1426
        %v1719 = vunpack.c.l.b16 %v1427
        %v1720 = vunpack.c.l.b16 %v1428
        %v1721 = vunpack.c.l.b16 %v1429
        %v1722 = vunpack.c.l.b16 %v1430
        %v1723 = vunpack.c.l.b16 %v1431
        %v1724 = vunpack.c.l.b16 %v1432
        %v1725 = vunpack.c.l.b16 %v1433
        %v1726 = vunpack.c.l.b16 %v1434
        %v1727 = vunpack.c.l.b16 %v1435
        %v1728 = vunpack.c.l.b16 %v1436
        %v1729 = vunpack.c.l.b16 %v1437
        %v1730 = vunpack.c.l.b16 %v1438
        %v1731 = vunpack.c.l.b16 %v1439
        %v1732 = vunpack.c.l.b16 %v1440
        %v1733 = vunpack.c.l.b16 %v1441
        %v1734 = vunpack.c.l.b16 %v1442
        %v1735 = vunpack.c.l.b16 %v1443
        %v1736 = vunpack.c.l.b16 %v1444
        %v1737 = vunpack.c.l.b16 %v1445
        %v1738 = vunpack.c.l.b16 %v1446
        %v1739 = vunpack.c.l.b16 %v1447
        %v1740 = vunpack.c.l.b16 %v1448
        %v1741 = vunpack.c.l.b16 %v1449
        %v1742 = vunpack.c.l.b16 %v1450
        %v1743 = vunpack.c.l.b16 %v1451
        %v1744 = vunpack.c.l.b16 %v1452
        %v1745 = vunpack.c.l.b16 %v1453
        %v1746 = vunpack.c.l.b16 %v1454
        %v1747 = vunpack.c.l.b16 %v1455
        %v1748 = vunpack.c.l.b16 %v1456
        %v1749 = vunpack.c.l.b16 %v1457
        %v1750 = vunpack.c.l.b16 %v1458
        %v1751 = vunpack.c.l.b16 %v1459
        %v1752 = vunpack.c.l.b16 %v1460
        %v1753 = vunpack.c.l.b16 %v1461
        %v1754 = vunpack.c.l.b16 %v1462
        %v1755 = vunpack.c.l.b16 %v1463
        %v1756 = vunpack.c.l.b16 %v1464
        %v1757 = vunpack.c.l.b16 %v1465
        %v1758 = vunpack.c.l.b16 %v1466
        %v1759 = vunpack.c.l.b16 %v1467
        %v1760 = vunpack.c.l.b16 %v1468
        %v1761 = vunpack.c.l.b16 %v1469
        %v1762 = vunpack.c.l.b16 %v1470
        %v1763 = vunpack.c.l.b16 %v1471
        %v1764 = vunpack.c.l.b16 %v1472
        %v1765 = vunpack.c.l.b16 %v1473
        %v1766 = vunpack.c.l.b16 %v1474
        %v1767 = vunpack.c.l.b16 %v1475
        %v1768 = vunpack.c.l.b16 %v1476
        %v1769 = vunpack.c.l.b16 %v1477
        %v1770 = vunpack.c.l.b16 %v1478
        %v1771 = vunpack.c.l.b16 %v1479
        %v1772 = vunpack.c.l.b16 %v1480
        %v1773 = vunpack.c.l.b16 %v1481
        %v1774 = vunpack.c.l.b16 %v1482
        %v1775 = vunpack.c.l.b16 %v1483
        %v1776 = vunpack.c.l.b16 %v1484
        %v1777 = vunpack.c.l.b16 %v1485
        %v1778 = vunpack.c.l.b16 %v1486
        %v1779 = vunpack.c.l.b16 %v1487
        %v1780 = vunpack.c.l.b16 %v1488
        %v1781 = vunpack.c.l.b16 %v1489
        %v1782 = vunpack.c.l.b16 %v1490
        %v1783 = vunpack.c.l.b16 %v1491
        %v1784 = vunpack.c.l.b16 %v1492
        %v1785 = vunpack.c.l.b16 %v1493
        %v1786 = vunpack.c.l.b16 %v1494
        %v1787 = vunpack.c.l.b16 %v1495
        %v1788 = vunpack.c.l.b16 %v1496
        %v1789 = vunpack.c.l.b16 %v1497
        %v1790 = vunpack.c.l.b16 %v1498
        %v1791 = vunpack.c.l.b16 %v1499
        %v1792 = vunpack.c.l.b16 %v1500
        %v1793 = vunpack.c.l.b16 %v1501
        %v1794 = vunpack.c.l.b16 %v1502
        %v1795 = vunpack.c.l.b16 %v1503
        %v1796 = vunpack.c.l.b16 %v1504
        %v1797 = vunpack.c.l.b16 %v1505
        %v1798 = vunpack.c.l.b16 %v1506
        %v1799 = vunpack.c.l.b16 %v1507
        %v1800 = vunpack.c.l.b16 %v1508
        %v1801 = vunpack.c.l.b16 %v1509
        %v1802 = vunpack.c.l.b16 %v1510
        %v1803 = vunpack.c.l.b16 %v1511
        %v1804 = vunpack.c.l.b16 %v1512
        %v1805 = vunpack.c.l.b16 %v1513
        %v1806 = vunpack.c.l.b16 %v1514
        %v1807 = vunpack.c.l.b16 %v1515
        %v1808 = vunpack.c.l.b16 %v1516
        %v1809 = vunpack.c.l.b16 %v1517
        %v1810 = vunpack.c.l.b16 %v1518
        %v1811 = vunpack.c.l.b16 %v1519
        %v1812 = vunpack.c.l.b16 %v1520
        %v1813 = vunpack.c.l.b16 %v1521
        %v1814 = vunpack.c.l.b16 %v1522
        %v1815 = vunpack.c.l.b16 %v1523
        %v1816 = vunpack.c.l.b16 %v1524
        %v1817 = vunpack.c.l.b16 %v1525
        %v1818 = vunpack.c.l.b16 %v1526
        %v1819 = vunpack.c.l.b16 %v1527
        %v1820 = vunpack.c.l.b16 %v1528
        %v1821 = vunpack.c.l.b16 %v1529
        %v1822 = vunpack.c.l.b16 %v1530
        %v1823 = vunpack.c.l.b16 %v1531
        %v1824 = vunpack.c.l.b16 %v1532
        %v1825 = vunpack.c.l.b16 %v1533
        %v1826 = vunpack.c.l.b16 %v1534
        %v1827 = vunpack.c.l.b16 %v1535
        %v1828 = vunpack.c.l.b16 %v1536
        %v1829 = vunpack.c.l.b16 %v1537
        %v1830 = vunpack.c.l.b16 %v1538
        %v1831 = vunpack.c.l.b16 %v1539
        %v1832 = vunpack.c.l.b16 %v1540
        %v1833 = vunpack.c.l.b16 %v1541
        %v1834 = vunpack.c.l.b16 %v1542
        %v1835 = vunpack.c.l.b16 %v1543
        %v1836 = vunpack.c.l.b16 %v1544
        %v1837 = vunpack.c.l.b16 %v1545
        %v1838 = vunpack.c.l.b16 %v1546
        %v1839 = vunpack.c.l.b16 %v1547
        %v1840 = vunpack.c.l.b16 %v1548
        %v1841 = vunpack.c.l.b16 %v1549
        %v1842 = vunpack.c.l.b16 %v1550
        %v1843 = vunpack.c.l.b16 %v1551
        %v1844 = vunpack.c.l.b16 %v1552
        %v1845 = vunpack.c.l.b16 %v1553
        %v1846 = vunpack.c.l.b16 %v1554
        %v1847 = vunpack.c.l.b16 %v1555
        %v1848 = vunpack.c.l.b16 %v1556
        %v1849 = vunpack.c.l.b16 %v1557
        %v1850 = vunpack.c.l.b16 %v1558
        %v1851 = vunpack.c.l.b16 %v1559
        %v1852 = vpack.c.b16 %v1709, %v1708
        %v1853 = vpack.c.b16 %v1711, %v1710
        %v1854 = vpack.c.b16 %v1713, %v1712
        %v1855 = vpack.c.b16 %v1715, %v1714
        %v1856 = vpack.c.b16 %v1717, %v1716
        %v1857 = vpack.c.b16 %v1719, %v1718
        %v1858 = vpack.c.b16 %v1721, %v1720
        %v1859 = vpack.c.b16 %v1723, %v1722
        %v1860 = vpack.c.b16 %v1725, %v1724
        %v1861 = vpack.c.b16 %v1727, %v1726
        %v1862 = vpack.c.b16 %v1729, %v1728
        %v1863 = vpack.c.b16 %v1731, %v1730
        %v1864 = vpack.c.b16 %v1733, %v1732
        %v1865 = vpack.c.b16 %v1735, %v1734
        %v1866 = vpack.c.b16 %v1737, %v1736
        %v1867 = vpack.c.b16 %v1739, %v1738
        %v1868 = vpack.c.b16 %v1741, %v1740
        %v1869 = vpack.c.b16 %v1743, %v1742
        %v1870 = vpack.c.b16 %v1745, %v1744
        %v1871 = vpack.c.b16 %v1747, %v1746
        %v1872 = vpack.c.b16 %v1749, %v1748
        %v1873 = vpack.c.b16 %v1751, %v1750
        %v1874 = vpack.c.b16 %v1753, %v1752
        %v1875 = vpack.c.b16 %v1755, %v1754
        %v1876 = vpack.c.b16 %v1757, %v1756
        %v1877 = vpack.c.b16 %v1759, %v1758
        %v1878 = vpack.c.b16 %v1761, %v1760
        %v1879 = vpack.c.b16 %v1763, %v1762
        %v1880 = vpack.c.b16 %v1765, %v1764
        %v1881 = vpack.c.b16 %v1767, %v1766
        %v1882 = vpack.c.b16 %v1769, %v1768
        %v1883 = vpack.c.b16 %v1771, %v1770
        %v1884 = vpack.c.b16 %v1773, %v1772
        %v1885 = vpack.c.b16 %v1775, %v1774
        %v1886 = vpack.c.b16 %v1777, %v1776
        %v1887 = vpack.c.b16 %v1779, %v1778
        %v1888 = vpack.c.b16 %v1781, %v1780
        %v1889 = vpack.c.b16 %v1783, %v1782
        %v1890 = vpack.c.b16 %v1785, %v1784
        %v1891 = vpack.c.b16 %v1787, %v1786
        %v1892 = vpack.c.b16 %v1789, %v1788
        %v1893 = vpack.c.b16 %v1791, %v1790
        %v1894 = vpack.c.b16 %v1793, %v1792
        %v1895 = vpack.c.b16 %v1795, %v1794
        %v1896 = vpack.c.b16 %v1797, %v1796
        %v1897 = vpack.c.b16 %v1799, %v1798
        %v1898 = vpack.c.b16 %v1801, %v1800
        %v1899 = vpack.c.b16 %v1803, %v1802
        %v1900 = vpack.c.b16 %v1805, %v1804
        %v1901 = vpack.c.b16 %v1807, %v1806
        %v1902 = vpack.c.b16 %v1809, %v1808
        %v1903 = vpack.c.b16 %v1811, %v1810
        %v1904 = vpack.c.b16 %v1813, %v1812
        %v1905 = vpack.c.b16 %v1815, %v1814
        %v1906 = vpack.c.b16 %v1817, %v1816
        %v1907 = vpack.c.b16 %v1819, %v1818
        %v1908 = vpack.c.b16 %v1821, %v1820
        %v1909 = vpack.c.b16 %v1823, %v1822
        %v1910 = vpack.c.b16 %v1825, %v1824
        %v1911 = vpack.c.b16 %v1827, %v1826
        %v1912 = vpack.c.b16 %v1829, %v1828
        %v1913 = vpack.c.b16 %v1831, %v1830
        %v1914 = vpack.c.b16 %v1833, %v1832
        %v1915 = vpack.c.b16 %v1835, %v1834
        %v1916 = vpack.c.b16 %v1837, %v1836
        %v1917 = vpack.c.b16 %v1839, %v1838
        %v1918 = vpack.c.b16 %v1841, %v1840
        %v1919 = vpack.c.b16 %v1843, %v1842
        %v1920 = vpack.c.b16 %v1845, %v1844
        %v1921 = vpack.c.b16 %v1847, %v1846
        %v1922 = vpack.c.b16 %v1849, %v1848
        %v1923 = vpack.c.b16 %v1851, %v1850
        %1996 = vmatpush.bf16.msra.mxu0 %v1859
        %1997 = vmatpush.bf16.msra.mxu0 %v1858
        %1998 = vmatpush.bf16.msra.mxu0 %v1857
        %1999 = vmatpush.bf16.msra.mxu0 %v1856
        %2000 = vmatpush.bf16.msra.mxu0 %v1855
        %2001 = vmatpush.bf16.msra.mxu0 %v1854
        %2002 = vmatpush.bf16.msra.mxu0 %v1853
        %2003 = vmatpush.bf16.msra.mxu0 %v1852
        %2004 = vmatmul.bf16.gmra.mxu0 %v1303
        %v2005 = vpop.f32.mrf.mxu0
        %v2006 = vadd.f32 %v1562, %v2005
        %v2007 = vpop.f32.mrf.mxu0
        %v2008 = vadd.f32 %v1562, %v2007
        %2009 = vmatmul.bf16.gmra.mxu0 %v1145
        %v2010 = vpop.f32.mrf.mxu0
        %v2011 = vadd.f32 %v1562, %v2010
        %v2012 = vpop.f32.mrf.mxu0
        %v2013 = vadd.f32 %v1562, %v2012
        %2014 = vmatmul.bf16.gmra.mxu0 %v1304
        %v2015 = vpop.f32.mrf.mxu0
        %v2016 = vadd.f32 %v1562, %v2015
        %v2017 = vpop.f32.mrf.mxu0
        %v2018 = vadd.f32 %v1562, %v2017
        %2019 = vmatmul.bf16.gmra.mxu0 %v1160
        %v2020 = vpop.f32.mrf.mxu0
        %v2021 = vadd.f32 %v1562, %v2020
        %v2022 = vpop.f32.mrf.mxu0
        %v2023 = vadd.f32 %v1562, %v2022
        %2024 = vmatmul.bf16.gmra.mxu0 %v1305
        %v2025 = vpop.f32.mrf.mxu0
        %v2026 = vadd.f32 %v1562, %v2025
        %v2027 = vpop.f32.mrf.mxu0
        %v2028 = vadd.f32 %v1562, %v2027
        %2029 = vmatmul.bf16.gmra.mxu0 %v1175
        %v2030 = vpop.f32.mrf.mxu0
        %v2031 = vadd.f32 %v1562, %v2030
        %v2032 = vpop.f32.mrf.mxu0
        %v2033 = vadd.f32 %v1562, %v2032
        %2034 = vmatmul.bf16.gmra.mxu0 %v1306
        %v2035 = vpop.f32.mrf.mxu0
        %v2036 = vadd.f32 %v1562, %v2035
        %v2037 = vpop.f32.mrf.mxu0
        %v2038 = vadd.f32 %v1562, %v2037
        %2039 = vmatmul.bf16.gmra.mxu0 %v1190
        %v2040 = vpop.f32.mrf.mxu0
        %v2041 = vadd.f32 %v1562, %v2040
        %v2042 = vpop.f32.mrf.mxu0
        %v2043 = vadd.f32 %v1562, %v2042
        %2044 = vmatmul.bf16.gmra.mxu0 %v1307
        %v2045 = vpop.f32.mrf.mxu0
        %v2046 = vadd.f32 %v1562, %v2045
        %v2047 = vpop.f32.mrf.mxu0
        %v2048 = vadd.f32 %v1562, %v2047
        %2049 = vmatmul.bf16.gmra.mxu0 %v1205
        %v2050 = vpop.f32.mrf.mxu0
        %v2051 = vadd.f32 %v1562, %v2050
        %v2052 = vpop.f32.mrf.mxu0
        %v2053 = vadd.f32 %v1562, %v2052
        %2054 = vmatmul.bf16.gmra.mxu0 %v1308
        %v2055 = vpop.f32.mrf.mxu0
        %v2056 = vadd.f32 %v1562, %v2055
        %v2057 = vpop.f32.mrf.mxu0
        %v2058 = vadd.f32 %v1562, %v2057
        %2059 = vmatmul.bf16.gmra.mxu0 %v1220
        %v2060 = vpop.f32.mrf.mxu0
        %v2061 = vadd.f32 %v1562, %v2060
        %v2062 = vpop.f32.mrf.mxu0
        %v2063 = vadd.f32 %v1562, %v2062
        %2064 = vmatmul.bf16.gmra.mxu0 %v1309
        %v2065 = vpop.f32.mrf.mxu0
        %v2066 = vadd.f32 %v1562, %v2065
        %v2067 = vpop.f32.mrf.mxu0
        %v2068 = vadd.f32 %v1562, %v2067
        %2069 = vmatmul.bf16.gmra.mxu0 %v1235
        %v2070 = vpop.f32.mrf.mxu0
        %v2071 = vadd.f32 %v1562, %v2070
        %v2072 = vpop.f32.mrf.mxu0
        %v2073 = vadd.f32 %v1562, %v2072
        %2074 = vmatmul.bf16.gmra.mxu0 %v1310
        %v2075 = vpop.f32.mrf.mxu0
        %v2076 = vadd.f32 %v1562, %v2075
        %v2077 = vpop.f32.mrf.mxu0
        %v2078 = vadd.f32 %v1562, %v2077
        %2079 = vmatmul.bf16.gmra.mxu0 %v1250
        %v2080 = vpop.f32.mrf.mxu0
        %v2081 = vadd.f32 %v1562, %v2080
        %v2082 = vpop.f32.mrf.mxu0
        %v2083 = vadd.f32 %v1562, %v2082
        %2084 = vdwg.mxu0
        %2085 = vmatpush.bf16.msra.mxu0 %v1867
        %2086 = vmatpush.bf16.msra.mxu0 %v1866
        %2087 = vmatpush.bf16.msra.mxu0 %v1865
        %2088 = vmatpush.bf16.msra.mxu0 %v1864
        %2089 = vmatpush.bf16.msra.mxu0 %v1863
        %2090 = vmatpush.bf16.msra.mxu0 %v1862
        %2091 = vmatpush.bf16.msra.mxu0 %v1861
        %2092 = vmatpush.bf16.msra.mxu0 %v1860
        %2093 = vmatmul.bf16.gmra.mxu0 %v1110
        %v2094 = vpop.f32.mrf.mxu0
        %v2095 = vadd.f32 %v2006, %v2094
        %v2096 = vpop.f32.mrf.mxu0
        %v2097 = vadd.f32 %v2008, %v2096
        %2098 = vmatmul.bf16.gmra.mxu0 %v1111
        %v2099 = vpop.f32.mrf.mxu0
        %v2100 = vadd.f32 %v2011, %v2099
        %v2101 = vpop.f32.mrf.mxu0
        %v2102 = vadd.f32 %v2013, %v2101
        %2103 = vmatmul.bf16.gmra.mxu0 %v1112
        %v2104 = vpop.f32.mrf.mxu0
        %v2105 = vadd.f32 %v2016, %v2104
        %v2106 = vpop.f32.mrf.mxu0
        %v2107 = vadd.f32 %v2018, %v2106
        %2108 = vmatmul.bf16.gmra.mxu0 %v1113
        %v2109 = vpop.f32.mrf.mxu0
        %v2110 = vadd.f32 %v2021, %v2109
        %v2111 = vpop.f32.mrf.mxu0
        %v2112 = vadd.f32 %v2023, %v2111
        %2113 = vmatmul.bf16.gmra.mxu0 %v1114
        %v2114 = vpop.f32.mrf.mxu0
        %v2115 = vadd.f32 %v2026, %v2114
        %v2116 = vpop.f32.mrf.mxu0
        %v2117 = vadd.f32 %v2028, %v2116
        %2118 = vmatmul.bf16.gmra.mxu0 %v1115
        %v2119 = vpop.f32.mrf.mxu0
        %v2120 = vadd.f32 %v2031, %v2119
        %v2121 = vpop.f32.mrf.mxu0
        %v2122 = vadd.f32 %v2033, %v2121
        %2123 = vmatmul.bf16.gmra.mxu0 %v1116
        %v2124 = vpop.f32.mrf.mxu0
        %v2125 = vadd.f32 %v2036, %v2124
        %v2126 = vpop.f32.mrf.mxu0
        %v2127 = vadd.f32 %v2038, %v2126
        %2128 = vmatmul.bf16.gmra.mxu0 %v1117
        %v2129 = vpop.f32.mrf.mxu0
        %v2130 = vadd.f32 %v2041, %v2129
        %v2131 = vpop.f32.mrf.mxu0
        %v2132 = vadd.f32 %v2043, %v2131
        %2133 = vmatmul.bf16.gmra.mxu0 %v1118
        %v2134 = vpop.f32.mrf.mxu0
        %v2135 = vadd.f32 %v2046, %v2134
        %v2136 = vpop.f32.mrf.mxu0
        %v2137 = vadd.f32 %v2048, %v2136
        %2138 = vmatmul.bf16.gmra.mxu0 %v1119
        %v2139 = vpop.f32.mrf.mxu0
        %v2140 = vadd.f32 %v2051, %v2139
        %v2141 = vpop.f32.mrf.mxu0
        %v2142 = vadd.f32 %v2053, %v2141
        %2143 = vmatmul.bf16.gmra.mxu0 %v1120
        %v2144 = vpop.f32.mrf.mxu0
        %v2145 = vadd.f32 %v2056, %v2144
        %v2146 = vpop.f32.mrf.mxu0
        %v2147 = vadd.f32 %v2058, %v2146
        %2148 = vmatmul.bf16.gmra.mxu0 %v1121
        %v2149 = vpop.f32.mrf.mxu0
        %v2150 = vadd.f32 %v2061, %v2149
        %v2151 = vpop.f32.mrf.mxu0
        %v2152 = vadd.f32 %v2063, %v2151
        %2153 = vmatmul.bf16.gmra.mxu0 %v1122
        %v2154 = vpop.f32.mrf.mxu0
        %v2155 = vadd.f32 %v2066, %v2154
        %v2156 = vpop.f32.mrf.mxu0
        %v2157 = vadd.f32 %v2068, %v2156
        %2158 = vmatmul.bf16.gmra.mxu0 %v1123
        %v2159 = vpop.f32.mrf.mxu0
        %v2160 = vadd.f32 %v2071, %v2159
        %v2161 = vpop.f32.mrf.mxu0
        %v2162 = vadd.f32 %v2073, %v2161
        %2163 = vmatmul.bf16.gmra.mxu0 %v1124
        %v2164 = vpop.f32.mrf.mxu0
        %v2165 = vadd.f32 %v2076, %v2164
        %v2166 = vpop.f32.mrf.mxu0
        %v2167 = vadd.f32 %v2078, %v2166
        %2168 = vmatmul.bf16.gmra.mxu0 %v1125
        %v2169 = vpop.f32.mrf.mxu0
        %v2170 = vadd.f32 %v2081, %v2169
        %v2171 = vpop.f32.mrf.mxu0
        %v2172 = vadd.f32 %v2083, %v2171
        %2173 = vdwg.mxu0
        %2174 = vmatpush.bf16.msra.mxu0 %v1875
        %2175 = vmatpush.bf16.msra.mxu0 %v1874
        %2176 = vmatpush.bf16.msra.mxu0 %v1873
        %2177 = vmatpush.bf16.msra.mxu0 %v1872
        %2178 = vmatpush.bf16.msra.mxu0 %v1871
        %2179 = vmatpush.bf16.msra.mxu0 %v1870
        %2180 = vmatpush.bf16.msra.mxu0 %v1869
        %2181 = vmatpush.bf16.msra.mxu0 %v1868
        %2182 = vmatmul.bf16.gmra.mxu0 %v1317
        %v2183 = vpop.f32.mrf.mxu0
        %v2184 = vadd.f32 %v2095, %v2183
        %v2185 = vpop.f32.mrf.mxu0
        %v2186 = vadd.f32 %v2097, %v2185
        %2187 = vmatmul.bf16.gmra.mxu0 %v1386
        %v2188 = vpop.f32.mrf.mxu0
        %v2189 = vadd.f32 %v2100, %v2188
        %v2190 = vpop.f32.mrf.mxu0
        %v2191 = vadd.f32 %v2102, %v2190
        %2192 = vmatmul.bf16.gmra.mxu0 %v1322
        %v2193 = vpop.f32.mrf.mxu0
        %v2194 = vadd.f32 %v2105, %v2193
        %v2195 = vpop.f32.mrf.mxu0
        %v2196 = vadd.f32 %v2107, %v2195
        %2197 = vmatmul.bf16.gmra.mxu0 %v1387
        %v2198 = vpop.f32.mrf.mxu0
        %v2199 = vadd.f32 %v2110, %v2198
        %v2200 = vpop.f32.mrf.mxu0
        %v2201 = vadd.f32 %v2112, %v2200
        %2202 = vmatmul.bf16.gmra.mxu0 %v1327
        %v2203 = vpop.f32.mrf.mxu0
        %v2204 = vadd.f32 %v2115, %v2203
        %v2205 = vpop.f32.mrf.mxu0
        %v2206 = vadd.f32 %v2117, %v2205
        %2207 = vmatmul.bf16.gmra.mxu0 %v1388
        %v2208 = vpop.f32.mrf.mxu0
        %v2209 = vadd.f32 %v2120, %v2208
        %v2210 = vpop.f32.mrf.mxu0
        %v2211 = vadd.f32 %v2122, %v2210
        %2212 = vmatmul.bf16.gmra.mxu0 %v1332
        %v2213 = vpop.f32.mrf.mxu0
        %v2214 = vadd.f32 %v2125, %v2213
        %v2215 = vpop.f32.mrf.mxu0
        %v2216 = vadd.f32 %v2127, %v2215
        %2217 = vmatmul.bf16.gmra.mxu0 %v1389
        %v2218 = vpop.f32.mrf.mxu0
        %v2219 = vadd.f32 %v2130, %v2218
        %v2220 = vpop.f32.mrf.mxu0
        %v2221 = vadd.f32 %v2132, %v2220
        %2222 = vmatmul.bf16.gmra.mxu0 %v1337
        %v2223 = vpop.f32.mrf.mxu0
        %v2224 = vadd.f32 %v2135, %v2223
        %v2225 = vpop.f32.mrf.mxu0
        %v2226 = vadd.f32 %v2137, %v2225
        %2227 = vmatmul.bf16.gmra.mxu0 %v1390
        %v2228 = vpop.f32.mrf.mxu0
        %v2229 = vadd.f32 %v2140, %v2228
        %v2230 = vpop.f32.mrf.mxu0
        %v2231 = vadd.f32 %v2142, %v2230
        %2232 = vmatmul.bf16.gmra.mxu0 %v1342
        %v2233 = vpop.f32.mrf.mxu0
        %v2234 = vadd.f32 %v2145, %v2233
        %v2235 = vpop.f32.mrf.mxu0
        %v2236 = vadd.f32 %v2147, %v2235
        %2237 = vmatmul.bf16.gmra.mxu0 %v1391
        %v2238 = vpop.f32.mrf.mxu0
        %v2239 = vadd.f32 %v2150, %v2238
        %v2240 = vpop.f32.mrf.mxu0
        %v2241 = vadd.f32 %v2152, %v2240
        %2242 = vmatmul.bf16.gmra.mxu0 %v1347
        %v2243 = vpop.f32.mrf.mxu0
        %v2244 = vadd.f32 %v2155, %v2243
        %v2245 = vpop.f32.mrf.mxu0
        %v2246 = vadd.f32 %v2157, %v2245
        %2247 = vmatmul.bf16.gmra.mxu0 %v1392
        %v2248 = vpop.f32.mrf.mxu0
        %v2249 = vadd.f32 %v2160, %v2248
        %v2250 = vpop.f32.mrf.mxu0
        %v2251 = vadd.f32 %v2162, %v2250
        %2252 = vmatmul.bf16.gmra.mxu0 %v1352
        %v2253 = vpop.f32.mrf.mxu0
        %v2254 = vadd.f32 %v2165, %v2253
        %v2255 = vpop.f32.mrf.mxu0
        %v2256 = vadd.f32 %v2167, %v2255
        %2257 = vmatmul.bf16.gmra.mxu0 %v1393
        %v2258 = vpop.f32.mrf.mxu0
        %v2259 = vadd.f32 %v2170, %v2258
        %v2260 = vpop.f32.mrf.mxu0
        %v2261 = vadd.f32 %v2172, %v2260
        %2262 = vdwg.mxu0
        %2263 = vmatpush.bf16.msra.mxu0 %v1883
        %2264 = vmatpush.bf16.msra.mxu0 %v1882
        %2265 = vmatpush.bf16.msra.mxu0 %v1881
        %2266 = vmatpush.bf16.msra.mxu0 %v1880
        %2267 = vmatpush.bf16.msra.mxu0 %v1879
        %2268 = vmatpush.bf16.msra.mxu0 %v1878
        %2269 = vmatpush.bf16.msra.mxu0 %v1877
        %2270 = vmatpush.bf16.msra.mxu0 %v1876
        %2271 = vmatmul.bf16.gmra.mxu0 %v1304
        %v2272 = vpop.f32.mrf.mxu0
        %v2273 = vadd.f32 %v2184, %v2272
        %v2274 = vpop.f32.mrf.mxu0
        %v2275 = vadd.f32 %v2186, %v2274
        %2276 = vmatmul.bf16.gmra.mxu0 %v1160
        %v2277 = vpop.f32.mrf.mxu0
        %v2278 = vadd.f32 %v2189, %v2277
        %v2279 = vpop.f32.mrf.mxu0
        %v2280 = vadd.f32 %v2191, %v2279
        %2281 = vmatmul.bf16.gmra.mxu0 %v1305
        %v2282 = vpop.f32.mrf.mxu0
        %v2283 = vadd.f32 %v2194, %v2282
        %v2284 = vpop.f32.mrf.mxu0
        %v2285 = vadd.f32 %v2196, %v2284
        %2286 = vmatmul.bf16.gmra.mxu0 %v1175
        %v2287 = vpop.f32.mrf.mxu0
        %v2288 = vadd.f32 %v2199, %v2287
        %v2289 = vpop.f32.mrf.mxu0
        %v2290 = vadd.f32 %v2201, %v2289
        %2291 = vmatmul.bf16.gmra.mxu0 %v1306
        %v2292 = vpop.f32.mrf.mxu0
        %v2293 = vadd.f32 %v2204, %v2292
        %v2294 = vpop.f32.mrf.mxu0
        %v2295 = vadd.f32 %v2206, %v2294
        %2296 = vmatmul.bf16.gmra.mxu0 %v1190
        %v2297 = vpop.f32.mrf.mxu0
        %v2298 = vadd.f32 %v2209, %v2297
        %v2299 = vpop.f32.mrf.mxu0
        %v2300 = vadd.f32 %v2211, %v2299
        %2301 = vmatmul.bf16.gmra.mxu0 %v1307
        %v2302 = vpop.f32.mrf.mxu0
        %v2303 = vadd.f32 %v2214, %v2302
        %v2304 = vpop.f32.mrf.mxu0
        %v2305 = vadd.f32 %v2216, %v2304
        %2306 = vmatmul.bf16.gmra.mxu0 %v1205
        %v2307 = vpop.f32.mrf.mxu0
        %v2308 = vadd.f32 %v2219, %v2307
        %v2309 = vpop.f32.mrf.mxu0
        %v2310 = vadd.f32 %v2221, %v2309
        %2311 = vmatmul.bf16.gmra.mxu0 %v1308
        %v2312 = vpop.f32.mrf.mxu0
        %v2313 = vadd.f32 %v2224, %v2312
        %v2314 = vpop.f32.mrf.mxu0
        %v2315 = vadd.f32 %v2226, %v2314
        %2316 = vmatmul.bf16.gmra.mxu0 %v1220
        %v2317 = vpop.f32.mrf.mxu0
        %v2318 = vadd.f32 %v2229, %v2317
        %v2319 = vpop.f32.mrf.mxu0
        %v2320 = vadd.f32 %v2231, %v2319
        %2321 = vmatmul.bf16.gmra.mxu0 %v1309
        %v2322 = vpop.f32.mrf.mxu0
        %v2323 = vadd.f32 %v2234, %v2322
        %v2324 = vpop.f32.mrf.mxu0
        %v2325 = vadd.f32 %v2236, %v2324
        %2326 = vmatmul.bf16.gmra.mxu0 %v1235
        %v2327 = vpop.f32.mrf.mxu0
        %v2328 = vadd.f32 %v2239, %v2327
        %v2329 = vpop.f32.mrf.mxu0
        %v2330 = vadd.f32 %v2241, %v2329
        %2331 = vmatmul.bf16.gmra.mxu0 %v1310
        %v2332 = vpop.f32.mrf.mxu0
        %v2333 = vadd.f32 %v2244, %v2332
        %v2334 = vpop.f32.mrf.mxu0
        %v2335 = vadd.f32 %v2246, %v2334
        %2336 = vmatmul.bf16.gmra.mxu0 %v1250
        %v2337 = vpop.f32.mrf.mxu0
        %v2338 = vadd.f32 %v2249, %v2337
        %v2339 = vpop.f32.mrf.mxu0
        %v2340 = vadd.f32 %v2251, %v2339
        %2341 = vmatmul.bf16.gmra.mxu0 %v1311
        %v2342 = vpop.f32.mrf.mxu0
        %v2343 = vadd.f32 %v2254, %v2342
        %v2344 = vpop.f32.mrf.mxu0
        %v2345 = vadd.f32 %v2256, %v2344
        %2346 = vmatmul.bf16.gmra.mxu0 %v1265
        %v2347 = vpop.f32.mrf.mxu0
        %v2348 = vadd.f32 %v2259, %v2347
        %v2349 = vpop.f32.mrf.mxu0
        %v2350 = vadd.f32 %v2261, %v2349
        %2351 = vdwg.mxu0
        %2352 = vmatpush.bf16.msra.mxu0 %v1891
        %2353 = vmatpush.bf16.msra.mxu0 %v1890
        %2354 = vmatpush.bf16.msra.mxu0 %v1889
        %2355 = vmatpush.bf16.msra.mxu0 %v1888
        %2356 = vmatpush.bf16.msra.mxu0 %v1887
        %2357 = vmatpush.bf16.msra.mxu0 %v1886
        %2358 = vmatpush.bf16.msra.mxu0 %v1885
        %2359 = vmatpush.bf16.msra.mxu0 %v1884
        %2360 = vmatmul.bf16.gmra.mxu0 %v1112
        %v2361 = vpop.f32.mrf.mxu0
        %v2362 = vadd.f32 %v2273, %v2361
        %v2363 = vpop.f32.mrf.mxu0
        %v2364 = vadd.f32 %v2275, %v2363
        %2365 = vmatmul.bf16.gmra.mxu0 %v1113
        %v2366 = vpop.f32.mrf.mxu0
        %v2367 = vadd.f32 %v2278, %v2366
        %v2368 = vpop.f32.mrf.mxu0
        %v2369 = vadd.f32 %v2280, %v2368
        %2370 = vmatmul.bf16.gmra.mxu0 %v1114
        %v2371 = vpop.f32.mrf.mxu0
        %v2372 = vadd.f32 %v2283, %v2371
        %v2373 = vpop.f32.mrf.mxu0
        %v2374 = vadd.f32 %v2285, %v2373
        %2375 = vmatmul.bf16.gmra.mxu0 %v1115
        %v2376 = vpop.f32.mrf.mxu0
        %v2377 = vadd.f32 %v2288, %v2376
        %v2378 = vpop.f32.mrf.mxu0
        %v2379 = vadd.f32 %v2290, %v2378
        %2380 = vmatmul.bf16.gmra.mxu0 %v1116
        %v2381 = vpop.f32.mrf.mxu0
        %v2382 = vadd.f32 %v2293, %v2381
        %v2383 = vpop.f32.mrf.mxu0
        %v2384 = vadd.f32 %v2295, %v2383
        %2385 = vmatmul.bf16.gmra.mxu0 %v1117
        %v2386 = vpop.f32.mrf.mxu0
        %v2387 = vadd.f32 %v2298, %v2386
        %v2388 = vpop.f32.mrf.mxu0
        %v2389 = vadd.f32 %v2300, %v2388
        %2390 = vmatmul.bf16.gmra.mxu0 %v1118
        %v2391 = vpop.f32.mrf.mxu0
        %v2392 = vadd.f32 %v2303, %v2391
        %v2393 = vpop.f32.mrf.mxu0
        %v2394 = vadd.f32 %v2305, %v2393
        %2395 = vmatmul.bf16.gmra.mxu0 %v1119
        %v2396 = vpop.f32.mrf.mxu0
        %v2397 = vadd.f32 %v2308, %v2396
        %v2398 = vpop.f32.mrf.mxu0
        %v2399 = vadd.f32 %v2310, %v2398
        %2400 = vmatmul.bf16.gmra.mxu0 %v1120
        %v2401 = vpop.f32.mrf.mxu0
        %v2402 = vadd.f32 %v2313, %v2401
        %v2403 = vpop.f32.mrf.mxu0
        %v2404 = vadd.f32 %v2315, %v2403
        %2405 = vmatmul.bf16.gmra.mxu0 %v1121
        %v2406 = vpop.f32.mrf.mxu0
        %v2407 = vadd.f32 %v2318, %v2406
        %v2408 = vpop.f32.mrf.mxu0
        %v2409 = vadd.f32 %v2320, %v2408
        %2410 = vmatmul.bf16.gmra.mxu0 %v1122
        %v2411 = vpop.f32.mrf.mxu0
        %v2412 = vadd.f32 %v2323, %v2411
        %v2413 = vpop.f32.mrf.mxu0
        %v2414 = vadd.f32 %v2325, %v2413
        %2415 = vmatmul.bf16.gmra.mxu0 %v1123
        %v2416 = vpop.f32.mrf.mxu0
        %v2417 = vadd.f32 %v2328, %v2416
        %v2418 = vpop.f32.mrf.mxu0
        %v2419 = vadd.f32 %v2330, %v2418
        %2420 = vmatmul.bf16.gmra.mxu0 %v1124
        %v2421 = vpop.f32.mrf.mxu0
        %v2422 = vadd.f32 %v2333, %v2421
        %v2423 = vpop.f32.mrf.mxu0
        %v2424 = vadd.f32 %v2335, %v2423
        %2425 = vmatmul.bf16.gmra.mxu0 %v1125
        %v2426 = vpop.f32.mrf.mxu0
        %v2427 = vadd.f32 %v2338, %v2426
        %v2428 = vpop.f32.mrf.mxu0
        %v2429 = vadd.f32 %v2340, %v2428
        %2430 = vmatmul.bf16.gmra.mxu0 %v1126
        %v2431 = vpop.f32.mrf.mxu0
        %v2432 = vadd.f32 %v2343, %v2431
        %v2433 = vpop.f32.mrf.mxu0
        %v2434 = vadd.f32 %v2345, %v2433
        %2435 = vmatmul.bf16.gmra.mxu0 %v1127
        %v2436 = vpop.f32.mrf.mxu0
        %v2437 = vadd.f32 %v2348, %v2436
        %v2438 = vpop.f32.mrf.mxu0
        %v2439 = vadd.f32 %v2350, %v2438
        %2440 = vdwg.mxu0
        %2441 = vmatpush.bf16.msra.mxu0 %v1899
        %2442 = vmatpush.bf16.msra.mxu0 %v1898
        %2443 = vmatpush.bf16.msra.mxu0 %v1897
        %2444 = vmatpush.bf16.msra.mxu0 %v1896
        %2445 = vmatpush.bf16.msra.mxu0 %v1895
        %2446 = vmatpush.bf16.msra.mxu0 %v1894
        %2447 = vmatpush.bf16.msra.mxu0 %v1893
        %2448 = vmatpush.bf16.msra.mxu0 %v1892
        %2449 = vmatmul.bf16.gmra.mxu0 %v1322
        %v2450 = vpop.f32.mrf.mxu0
        %v2451 = vadd.f32 %v2362, %v2450
        %v2452 = vpop.f32.mrf.mxu0
        %v2453 = vadd.f32 %v2364, %v2452
        %2454 = vmatmul.bf16.gmra.mxu0 %v1387
        %v2455 = vpop.f32.mrf.mxu0
        %v2456 = vadd.f32 %v2367, %v2455
        %v2457 = vpop.f32.mrf.mxu0
        %v2458 = vadd.f32 %v2369, %v2457
        %2459 = vmatmul.bf16.gmra.mxu0 %v1327
        %v2460 = vpop.f32.mrf.mxu0
        %v2461 = vadd.f32 %v2372, %v2460
        %v2462 = vpop.f32.mrf.mxu0
        %v2463 = vadd.f32 %v2374, %v2462
        %2464 = vmatmul.bf16.gmra.mxu0 %v1388
        %v2465 = vpop.f32.mrf.mxu0
        %v2466 = vadd.f32 %v2377, %v2465
        %v2467 = vpop.f32.mrf.mxu0
        %v2468 = vadd.f32 %v2379, %v2467
        %2469 = vmatmul.bf16.gmra.mxu0 %v1332
        %v2470 = vpop.f32.mrf.mxu0
        %v2471 = vadd.f32 %v2382, %v2470
        %v2472 = vpop.f32.mrf.mxu0
        %v2473 = vadd.f32 %v2384, %v2472
        %2474 = vmatmul.bf16.gmra.mxu0 %v1389
        %v2475 = vpop.f32.mrf.mxu0
        %v2476 = vadd.f32 %v2387, %v2475
        %v2477 = vpop.f32.mrf.mxu0
        %v2478 = vadd.f32 %v2389, %v2477
        %2479 = vmatmul.bf16.gmra.mxu0 %v1337
        %v2480 = vpop.f32.mrf.mxu0
        %v2481 = vadd.f32 %v2392, %v2480
        %v2482 = vpop.f32.mrf.mxu0
        %v2483 = vadd.f32 %v2394, %v2482
        %2484 = vmatmul.bf16.gmra.mxu0 %v1390
        %v2485 = vpop.f32.mrf.mxu0
        %v2486 = vadd.f32 %v2397, %v2485
        %v2487 = vpop.f32.mrf.mxu0
        %v2488 = vadd.f32 %v2399, %v2487
        %2489 = vmatmul.bf16.gmra.mxu0 %v1342
        %v2490 = vpop.f32.mrf.mxu0
        %v2491 = vadd.f32 %v2402, %v2490
        %v2492 = vpop.f32.mrf.mxu0
        %v2493 = vadd.f32 %v2404, %v2492
        %2494 = vmatmul.bf16.gmra.mxu0 %v1391
        %v2495 = vpop.f32.mrf.mxu0
        %v2496 = vadd.f32 %v2407, %v2495
        %v2497 = vpop.f32.mrf.mxu0
        %v2498 = vadd.f32 %v2409, %v2497
        %2499 = vmatmul.bf16.gmra.mxu0 %v1347
        %v2500 = vpop.f32.mrf.mxu0
        %v2501 = vadd.f32 %v2412, %v2500
        %v2502 = vpop.f32.mrf.mxu0
        %v2503 = vadd.f32 %v2414, %v2502
        %2504 = vmatmul.bf16.gmra.mxu0 %v1392
        %v2505 = vpop.f32.mrf.mxu0
        %v2506 = vadd.f32 %v2417, %v2505
        %v2507 = vpop.f32.mrf.mxu0
        %v2508 = vadd.f32 %v2419, %v2507
        %2509 = vmatmul.bf16.gmra.mxu0 %v1352
        %v2510 = vpop.f32.mrf.mxu0
        %v2511 = vadd.f32 %v2422, %v2510
        %v2512 = vpop.f32.mrf.mxu0
        %v2513 = vadd.f32 %v2424, %v2512
        %2514 = vmatmul.bf16.gmra.mxu0 %v1393
        %v2515 = vpop.f32.mrf.mxu0
        %v2516 = vadd.f32 %v2427, %v2515
        %v2517 = vpop.f32.mrf.mxu0
        %v2518 = vadd.f32 %v2429, %v2517
        %2519 = vmatmul.bf16.gmra.mxu0 %v1357
        %v2520 = vpop.f32.mrf.mxu0
        %v2521 = vadd.f32 %v2432, %v2520
        %v2522 = vpop.f32.mrf.mxu0
        %v2523 = vadd.f32 %v2434, %v2522
        %2524 = vmatmul.bf16.gmra.mxu0 %v1394
        %v2525 = vpop.f32.mrf.mxu0
        %v2526 = vadd.f32 %v2437, %v2525
        %v2527 = vpop.f32.mrf.mxu0
        %v2528 = vadd.f32 %v2439, %v2527
        %2529 = vdwg.mxu0
        %2530 = vmatpush.bf16.msra.mxu0 %v1907
        %2531 = vmatpush.bf16.msra.mxu0 %v1906
        %2532 = vmatpush.bf16.msra.mxu0 %v1905
        %2533 = vmatpush.bf16.msra.mxu0 %v1904
        %2534 = vmatpush.bf16.msra.mxu0 %v1903
        %2535 = vmatpush.bf16.msra.mxu0 %v1902
        %2536 = vmatpush.bf16.msra.mxu0 %v1901
        %2537 = vmatpush.bf16.msra.mxu0 %v1900
        %2538 = vmatmul.bf16.gmra.mxu0 %v1305
        %v2539 = vpop.f32.mrf.mxu0
        %v2540 = vadd.f32 %v2451, %v2539
        %v2541 = vpop.f32.mrf.mxu0
        %v2542 = vadd.f32 %v2453, %v2541
        %2543 = vmatmul.bf16.gmra.mxu0 %v1175
        %v2544 = vpop.f32.mrf.mxu0
        %v2545 = vadd.f32 %v2456, %v2544
        %v2546 = vpop.f32.mrf.mxu0
        %v2547 = vadd.f32 %v2458, %v2546
        %2548 = vmatmul.bf16.gmra.mxu0 %v1306
        %v2549 = vpop.f32.mrf.mxu0
        %v2550 = vadd.f32 %v2461, %v2549
        %v2551 = vpop.f32.mrf.mxu0
        %v2552 = vadd.f32 %v2463, %v2551
        %2553 = vmatmul.bf16.gmra.mxu0 %v1190
        %v2554 = vpop.f32.mrf.mxu0
        %v2555 = vadd.f32 %v2466, %v2554
        %v2556 = vpop.f32.mrf.mxu0
        %v2557 = vadd.f32 %v2468, %v2556
        %2558 = vmatmul.bf16.gmra.mxu0 %v1307
        %v2559 = vpop.f32.mrf.mxu0
        %v2560 = vadd.f32 %v2471, %v2559
        %v2561 = vpop.f32.mrf.mxu0
        %v2562 = vadd.f32 %v2473, %v2561
        %2563 = vmatmul.bf16.gmra.mxu0 %v1205
        %v2564 = vpop.f32.mrf.mxu0
        %v2565 = vadd.f32 %v2476, %v2564
        %v2566 = vpop.f32.mrf.mxu0
        %v2567 = vadd.f32 %v2478, %v2566
        %2568 = vmatmul.bf16.gmra.mxu0 %v1308
        %v2569 = vpop.f32.mrf.mxu0
        %v2570 = vadd.f32 %v2481, %v2569
        %v2571 = vpop.f32.mrf.mxu0
        %v2572 = vadd.f32 %v2483, %v2571
        %2573 = vmatmul.bf16.gmra.mxu0 %v1220
        %v2574 = vpop.f32.mrf.mxu0
        %v2575 = vadd.f32 %v2486, %v2574
        %v2576 = vpop.f32.mrf.mxu0
        %v2577 = vadd.f32 %v2488, %v2576
        %2578 = vmatmul.bf16.gmra.mxu0 %v1309
        %v2579 = vpop.f32.mrf.mxu0
        %v2580 = vadd.f32 %v2491, %v2579
        %v2581 = vpop.f32.mrf.mxu0
        %v2582 = vadd.f32 %v2493, %v2581
        %2583 = vmatmul.bf16.gmra.mxu0 %v1235
        %v2584 = vpop.f32.mrf.mxu0
        %v2585 = vadd.f32 %v2496, %v2584
        %v2586 = vpop.f32.mrf.mxu0
        %v2587 = vadd.f32 %v2498, %v2586
        %2588 = vmatmul.bf16.gmra.mxu0 %v1310
        %v2589 = vpop.f32.mrf.mxu0
        %v2590 = vadd.f32 %v2501, %v2589
        %v2591 = vpop.f32.mrf.mxu0
        %v2592 = vadd.f32 %v2503, %v2591
        %2593 = vmatmul.bf16.gmra.mxu0 %v1250
        %v2594 = vpop.f32.mrf.mxu0
        %v2595 = vadd.f32 %v2506, %v2594
        %v2596 = vpop.f32.mrf.mxu0
        %v2597 = vadd.f32 %v2508, %v2596
        %2598 = vmatmul.bf16.gmra.mxu0 %v1311
        %v2599 = vpop.f32.mrf.mxu0
        %v2600 = vadd.f32 %v2511, %v2599
        %v2601 = vpop.f32.mrf.mxu0
        %v2602 = vadd.f32 %v2513, %v2601
        %2603 = vmatmul.bf16.gmra.mxu0 %v1265
        %v2604 = vpop.f32.mrf.mxu0
        %v2605 = vadd.f32 %v2516, %v2604
        %v2606 = vpop.f32.mrf.mxu0
        %v2607 = vadd.f32 %v2518, %v2606
        %2608 = vmatmul.bf16.gmra.mxu0 %v1312
        %v2609 = vpop.f32.mrf.mxu0
        %v2610 = vadd.f32 %v2521, %v2609
        %v2611 = vpop.f32.mrf.mxu0
        %v2612 = vadd.f32 %v2523, %v2611
        %2613 = vmatmul.bf16.gmra.mxu0 %v1280
        %v2614 = vpop.f32.mrf.mxu0
        %v2615 = vadd.f32 %v2526, %v2614
        %v2616 = vpop.f32.mrf.mxu0
        %v2617 = vadd.f32 %v2528, %v2616
        %2618 = vdwg.mxu0
        %2619 = vmatpush.bf16.msra.mxu0 %v1915
        %2620 = vmatpush.bf16.msra.mxu0 %v1914
        %2621 = vmatpush.bf16.msra.mxu0 %v1913
        %2622 = vmatpush.bf16.msra.mxu0 %v1912
        %2623 = vmatpush.bf16.msra.mxu0 %v1911
        %2624 = vmatpush.bf16.msra.mxu0 %v1910
        %2625 = vmatpush.bf16.msra.mxu0 %v1909
        %2626 = vmatpush.bf16.msra.mxu0 %v1908
        %2627 = vmatmul.bf16.gmra.mxu0 %v1114
        %v2628 = vpop.f32.mrf.mxu0
        %v2629 = vadd.f32 %v2540, %v2628
        %v2630 = vpop.f32.mrf.mxu0
        %v2631 = vadd.f32 %v2542, %v2630
        %2632 = vmatmul.bf16.gmra.mxu0 %v1115
        %v2633 = vpop.f32.mrf.mxu0
        %v2634 = vadd.f32 %v2545, %v2633
        %v2635 = vpop.f32.mrf.mxu0
        %v2636 = vadd.f32 %v2547, %v2635
        %2637 = vmatmul.bf16.gmra.mxu0 %v1116
        %v2638 = vpop.f32.mrf.mxu0
        %v2639 = vadd.f32 %v2550, %v2638
        %v2640 = vpop.f32.mrf.mxu0
        %v2641 = vadd.f32 %v2552, %v2640
        %2642 = vmatmul.bf16.gmra.mxu0 %v1117
        %v2643 = vpop.f32.mrf.mxu0
        %v2644 = vadd.f32 %v2555, %v2643
        %v2645 = vpop.f32.mrf.mxu0
        %v2646 = vadd.f32 %v2557, %v2645
        %2647 = vmatmul.bf16.gmra.mxu0 %v1118
        %v2648 = vpop.f32.mrf.mxu0
        %v2649 = vadd.f32 %v2560, %v2648
        %v2650 = vpop.f32.mrf.mxu0
        %v2651 = vadd.f32 %v2562, %v2650
        %2652 = vmatmul.bf16.gmra.mxu0 %v1119
        %v2653 = vpop.f32.mrf.mxu0
        %v2654 = vadd.f32 %v2565, %v2653
        %v2655 = vpop.f32.mrf.mxu0
        %v2656 = vadd.f32 %v2567, %v2655
        %2657 = vmatmul.bf16.gmra.mxu0 %v1120
        %v2658 = vpop.f32.mrf.mxu0
        %v2659 = vadd.f32 %v2570, %v2658
        %v2660 = vpop.f32.mrf.mxu0
        %v2661 = vadd.f32 %v2572, %v2660
        %2662 = vmatmul.bf16.gmra.mxu0 %v1121
        %v2663 = vpop.f32.mrf.mxu0
        %v2664 = vadd.f32 %v2575, %v2663
        %v2665 = vpop.f32.mrf.mxu0
        %v2666 = vadd.f32 %v2577, %v2665
        %2667 = vmatmul.bf16.gmra.mxu0 %v1122
        %v2668 = vpop.f32.mrf.mxu0
        %v2669 = vadd.f32 %v2580, %v2668
        %v2670 = vpop.f32.mrf.mxu0
        %v2671 = vadd.f32 %v2582, %v2670
        %2672 = vmatmul.bf16.gmra.mxu0 %v1123
        %v2673 = vpop.f32.mrf.mxu0
        %v2674 = vadd.f32 %v2585, %v2673
        %v2675 = vpop.f32.mrf.mxu0
        %v2676 = vadd.f32 %v2587, %v2675
        %2677 = vmatmul.bf16.gmra.mxu0 %v1124
        %v2678 = vpop.f32.mrf.mxu0
        %v2679 = vadd.f32 %v2590, %v2678
        %v2680 = vpop.f32.mrf.mxu0
        %v2681 = vadd.f32 %v2592, %v2680
        %2682 = vmatmul.bf16.gmra.mxu0 %v1125
        %v2683 = vpop.f32.mrf.mxu0
        %v2684 = vadd.f32 %v2595, %v2683
        %v2685 = vpop.f32.mrf.mxu0
        %v2686 = vadd.f32 %v2597, %v2685
        %2687 = vmatmul.bf16.gmra.mxu0 %v1126
        %v2688 = vpop.f32.mrf.mxu0
        %v2689 = vadd.f32 %v2600, %v2688
        %v2690 = vpop.f32.mrf.mxu0
        %v2691 = vadd.f32 %v2602, %v2690
        %2692 = vmatmul.bf16.gmra.mxu0 %v1127
        %v2693 = vpop.f32.mrf.mxu0
        %v2694 = vadd.f32 %v2605, %v2693
        %v2695 = vpop.f32.mrf.mxu0
        %v2696 = vadd.f32 %v2607, %v2695
        %2697 = vmatmul.bf16.gmra.mxu0 %v1128
        %v2698 = vpop.f32.mrf.mxu0
        %v2699 = vadd.f32 %v2610, %v2698
        %v2700 = vpop.f32.mrf.mxu0
        %v2701 = vadd.f32 %v2612, %v2700
        %2702 = vmatmul.bf16.gmra.mxu0 %v1129
        %v2703 = vpop.f32.mrf.mxu0
        %v2704 = vadd.f32 %v2615, %v2703
        %v2705 = vpop.f32.mrf.mxu0
        %v2706 = vadd.f32 %v2617, %v2705
        %2707 = vdwg.mxu0
        %2708 = vmatpush.bf16.msra.mxu0 %v1923
        %2709 = vmatpush.bf16.msra.mxu0 %v1922
        %2710 = vmatpush.bf16.msra.mxu0 %v1921
        %2711 = vmatpush.bf16.msra.mxu0 %v1920
        %2712 = vmatpush.bf16.msra.mxu0 %v1919
        %2713 = vmatpush.bf16.msra.mxu0 %v1918
        %2714 = vmatpush.bf16.msra.mxu0 %v1917
        %2715 = vmatpush.bf16.msra.mxu0 %v1916
        %2716 = vmatmul.bf16.gmra.mxu0 %v1327
        %v2717 = vpop.f32.mrf.mxu0
        %v2718 = vadd.f32 %v2629, %v2717
        %v2719 = vpop.f32.mrf.mxu0
        %v2720 = vadd.f32 %v2631, %v2719
        %2721 = vmatmul.bf16.gmra.mxu0 %v1388
        %v2722 = vpop.f32.mrf.mxu0
        %v2723 = vadd.f32 %v2634, %v2722
        %v2724 = vpop.f32.mrf.mxu0
        %v2725 = vadd.f32 %v2636, %v2724
        %2726 = vmatmul.bf16.gmra.mxu0 %v1332
        %v2727 = vpop.f32.mrf.mxu0
        %v2728 = vadd.f32 %v2639, %v2727
        %v2729 = vpop.f32.mrf.mxu0
        %v2730 = vadd.f32 %v2641, %v2729
        %2731 = vmatmul.bf16.gmra.mxu0 %v1389
        %v2732 = vpop.f32.mrf.mxu0
        %v2733 = vadd.f32 %v2644, %v2732
        %v2734 = vpop.f32.mrf.mxu0
        %v2735 = vadd.f32 %v2646, %v2734
        %2736 = vmatmul.bf16.gmra.mxu0 %v1337
        %v2737 = vpop.f32.mrf.mxu0
        %v2738 = vadd.f32 %v2649, %v2737
        %v2739 = vpop.f32.mrf.mxu0
        %v2740 = vadd.f32 %v2651, %v2739
        %2741 = vmatmul.bf16.gmra.mxu0 %v1390
        %v2742 = vpop.f32.mrf.mxu0
        %v2743 = vadd.f32 %v2654, %v2742
        %v2744 = vpop.f32.mrf.mxu0
        %v2745 = vadd.f32 %v2656, %v2744
        %2746 = vmatmul.bf16.gmra.mxu0 %v1342
        %v2747 = vpop.f32.mrf.mxu0
        %v2748 = vadd.f32 %v2659, %v2747
        %v2749 = vpop.f32.mrf.mxu0
        %v2750 = vadd.f32 %v2661, %v2749
        %2751 = vmatmul.bf16.gmra.mxu0 %v1391
        %v2752 = vpop.f32.mrf.mxu0
        %v2753 = vadd.f32 %v2664, %v2752
        %v2754 = vpop.f32.mrf.mxu0
        %v2755 = vadd.f32 %v2666, %v2754
        %2756 = vmatmul.bf16.gmra.mxu0 %v1347
        %v2757 = vpop.f32.mrf.mxu0
        %v2758 = vadd.f32 %v2669, %v2757
        %v2759 = vpop.f32.mrf.mxu0
        %v2760 = vadd.f32 %v2671, %v2759
        %2761 = vmatmul.bf16.gmra.mxu0 %v1392
        %v2762 = vpop.f32.mrf.mxu0
        %v2763 = vadd.f32 %v2674, %v2762
        %v2764 = vpop.f32.mrf.mxu0
        %v2765 = vadd.f32 %v2676, %v2764
        %2766 = vmatmul.bf16.gmra.mxu0 %v1352
        %v2767 = vpop.f32.mrf.mxu0
        %v2768 = vadd.f32 %v2679, %v2767
        %v2769 = vpop.f32.mrf.mxu0
        %v2770 = vadd.f32 %v2681, %v2769
        %2771 = vmatmul.bf16.gmra.mxu0 %v1393
        %v2772 = vpop.f32.mrf.mxu0
        %v2773 = vadd.f32 %v2684, %v2772
        %v2774 = vpop.f32.mrf.mxu0
        %v2775 = vadd.f32 %v2686, %v2774
        %2776 = vmatmul.bf16.gmra.mxu0 %v1357
        %v2777 = vpop.f32.mrf.mxu0
        %v2778 = vadd.f32 %v2689, %v2777
        %v2779 = vpop.f32.mrf.mxu0
        %v2780 = vadd.f32 %v2691, %v2779
        %2781 = vmatmul.bf16.gmra.mxu0 %v1394
        %v2782 = vpop.f32.mrf.mxu0
        %v2783 = vadd.f32 %v2694, %v2782
        %v2784 = vpop.f32.mrf.mxu0
        %v2785 = vadd.f32 %v2696, %v2784
        %2786 = vmatmul.bf16.gmra.mxu0 %v1362
        %v2787 = vpop.f32.mrf.mxu0
        %v2788 = vadd.f32 %v2699, %v2787
        %v2789 = vpop.f32.mrf.mxu0
        %v2790 = vadd.f32 %v2701, %v2789
        %2791 = vmatmul.bf16.gmra.mxu0 %v1395
        %v2792 = vpop.f32.mrf.mxu0
        %v2793 = vadd.f32 %v2704, %v2792
        %v2794 = vpop.f32.mrf.mxu0
        %v2795 = vadd.f32 %v2706, %v2794
        %2796 = vdwg.mxu0
        %v2797 = vpack.c.bf16 %v2718, %v2718
        %v2798 = vpack.c.bf16 %v2720, %v2720
        %v2799 = vpack.c.bf16 %v2723, %v2723
        %v2800 = vpack.c.bf16 %v2725, %v2725
        %v2801 = vpack.c.bf16 %v2728, %v2728
        %v2802 = vpack.c.bf16 %v2730, %v2730
        %v2803 = vpack.c.bf16 %v2733, %v2733
        %v2804 = vpack.c.bf16 %v2735, %v2735
        %v2805 = vpack.c.bf16 %v2738, %v2738
        %v2806 = vpack.c.bf16 %v2740, %v2740
        %v2807 = vpack.c.bf16 %v2743, %v2743
        %v2808 = vpack.c.bf16 %v2745, %v2745
        %v2809 = vpack.c.bf16 %v2748, %v2748
        %v2810 = vpack.c.bf16 %v2750, %v2750
        %v2811 = vpack.c.bf16 %v2753, %v2753
        %v2812 = vpack.c.bf16 %v2755, %v2755
        %v2813 = vpack.c.bf16 %v2758, %v2758
        %v2814 = vpack.c.bf16 %v2760, %v2760
        %v2815 = vpack.c.bf16 %v2763, %v2763
        %v2816 = vpack.c.bf16 %v2765, %v2765
        %v2817 = vpack.c.bf16 %v2768, %v2768
        %v2818 = vpack.c.bf16 %v2770, %v2770
        %v2819 = vpack.c.bf16 %v2773, %v2773
        %v2820 = vpack.c.bf16 %v2775, %v2775
        %v2821 = vpack.c.bf16 %v2778, %v2778
        %v2822 = vpack.c.bf16 %v2780, %v2780
        %v2823 = vpack.c.bf16 %v2783, %v2783
        %v2824 = vpack.c.bf16 %v2785, %v2785
        %v2825 = vpack.c.bf16 %v2788, %v2788
        %v2826 = vpack.c.bf16 %v2790, %v2790
        %v2827 = vpack.c.bf16 %v2793, %v2793
        %v2828 = vpack.c.bf16 %v2795, %v2795
        %2829 = vst [vmem:[%s633] sm:$0xf] %v2797
        %2830 = vst [vmem:[%s633 + $0x4] sm:$0xf] %v2798
        %2831 = vst [vmem:[%s633 + $0x8] sm:$0xf] %v2799
        %2832 = vst [vmem:[%s633 + $0xc] sm:$0xf] %v2800
        %2833 = vst [vmem:[%s633 + $0x10] sm:$0xf] %v2801
        %2834 = vst [vmem:[%s633 + $0x14] sm:$0xf] %v2802
        %2835 = vst [vmem:[%s633 + $0x18] sm:$0xf] %v2803
        %2836 = vst [vmem:[%s633 + $0x1c] sm:$0xf] %v2804
        %2837 = vst [vmem:[%s633 + $0x20] sm:$0xf] %v2805
        %2838 = vst [vmem:[%s633 + $0x24] sm:$0xf] %v2806
        %2839 = vst [vmem:[%s633 + $0x28] sm:$0xf] %v2807
        %2840 = vst [vmem:[%s633 + $0x2c] sm:$0xf] %v2808
        %2841 = vst [vmem:[%s633 + $0x30] sm:$0xf] %v2809
        %2842 = vst [vmem:[%s633 + $0x34] sm:$0xf] %v2810
        %2843 = vst [vmem:[%s633 + $0x38] sm:$0xf] %v2811
        %2844 = vst [vmem:[%s633 + $0x3c] sm:$0xf] %v2812
        %2845 = vst [vmem:[%s633 + $0x40] sm:$0xf] %v2813
        %2846 = vst [vmem:[%s633 + $0x44] sm:$0xf] %v2814
        %2847 = vst [vmem:[%s633 + $0x48] sm:$0xf] %v2815
        %2848 = vst [vmem:[%s633 + $0x4c] sm:$0xf] %v2816
        %2849 = vst [vmem:[%s633 + $0x50] sm:$0xf] %v2817
        %2850 = vst [vmem:[%s633 + $0x54] sm:$0xf] %v2818
        %2851 = vst [vmem:[%s633 + $0x58] sm:$0xf] %v2819
        %2852 = vst [vmem:[%s633 + $0x5c] sm:$0xf] %v2820
        %2853 = vst [vmem:[%s633 + $0x60] sm:$0xf] %v2821
        %2854 = vst [vmem:[%s633 + $0x64] sm:$0xf] %v2822
        %2855 = vst [vmem:[%s633 + $0x68] sm:$0xf] %v2823
        %2856 = vst [vmem:[%s633 + $0x6c] sm:$0xf] %v2824
        %2857 = vst [vmem:[%s633 + $0x70] sm:$0xf] %v2825
        %2858 = vst [vmem:[%s633 + $0x74] sm:$0xf] %v2826
        %2859 = vst [vmem:[%s633 + $0x78] sm:$0xf] %v2827
        %2860 = vst [vmem:[%s633 + $0x7c] sm:$0xf] %v2828
        %s2861 = sand.u32 %s298, 1
        %s2862 = scalar_lea.sflag [#allocation4], %s2861
        %s2863 = sand.u32 %s298, 1
        %s2864 = smul.addr %s2863, 128
        %s2865 = scalar_lea.vmem [#allocation14], %s2864
        // Predicated region
        $region81: #{tpu_custom_call.1} parent=51 // pred_check
          %p2866 = pneg %p308
        $region82: #{tpu_custom_call.1} parent=51 // pred_check_branch
          %2868 = sbr.rel (%p2866) target = $region84
        $region83: #{tpu_custom_call.1} parent=51 // pred_region
          %s2869 = smul.u32 8, %s39
          %2871 = vsyncadd %s2862, 0
          %s2872 = smul.addr %s2869, 4
          %s2873 = smul.addr %s38, 128
          %s2874 = sadd.s32 %s2872, %s2873
          %s2875 = smul.addr %s2874, 4
          %s2876 = scalar_lea.hbm %s8, %s2875
          %s2877 = sshll.u32 %s2865, 4
          %s2878 = int_to_ptr.vmem [resolvable:$true] %s2877
          %s2879 = sshll.u32 %s2876, 4
          %s2880 = int_to_ptr.hbm [resolvable:$true] %s2879
          %2885 = dma.vmem_to_hbm [thread:$0]  %s2878, 2048, %s2880, %s2862, 64, 64, 4
        $region84: #{tpu_custom_call.1} parent=51 // pred_fallthru
          _
      $region52: #{tpu_custom_call.1} parent=5 // pred_fallthru
        _
      %p2886 = scmp.le.s32.totalorder 2, %s29
      // Predicated region
      $region85: #{tpu_custom_call.1} parent=5 // pred_check
        %p2887 = pneg %p2886
      $region86: #{tpu_custom_call.1} parent=5 // pred_check_branch
        %2889 = sbr.rel (%p2887) target = $region88
      $region87: #{tpu_custom_call.1} parent=5 // pred_region
        %s2890 = ssub.s32 %s29, 2
        // Predicated region
        $region89: #{tpu_custom_call.1} parent=87 // pred_check
          %p2891 = pneg %p314
        $region90: #{tpu_custom_call.1} parent=87 // pred_check_branch
          %2893 = sbr.rel (%p2891) target = $region92
        $region91: #{tpu_custom_call.1} parent=87 // pred_region
          %s2894 = sand.u32 %s299, 1
          %s2895 = scalar_lea.sflag [#allocation4], %s2894
          %s2896 = sand.u32 %s299, 1
          %s2897 = smul.addr %s2896, 128
          %s2898 = scalar_lea.vmem [#allocation14], %s2897
          %2900 = dma.done %s2895, 2048
        $region92: #{tpu_custom_call.1} parent=87 // pred_fallthru
          _
      $region88: #{tpu_custom_call.1} parent=5 // pred_fallthru
        _
    $region6: #{tpu_custom_call.1} parent=1 // loop_footer
      %s33 = sadd.s32 1, %s29
    $region7: #{tpu_custom_call.1} parent=1 // loop_footer_branch
      %28 = sbr.rel target = $region3
    $region8: #{tpu_custom_call.1} parent=1 // loop_exit
      _
    %2901 = vsyncpa [#allocation3], 1
    %s2902 = scalar_lea.sflag [#allocation3], 1
    %2903 = vsyncpa %s2902, 1
    %2904 = vsyncpa [#allocation6], 1
    %s2905 = scalar_lea.sflag [#allocation6], 1
    %2906 = vsyncpa %s2905, 1
    %2907 = vsyncpa [#allocation9], 1
    %s2908 = scalar_lea.sflag [#allocation9], 1
    %2909 = vsyncpa %s2908, 1
    %2910 = vsyncpa [#allocation12], 1
    %s2911 = scalar_lea.sflag [#allocation12], 1
    %2912 = vsyncpa %s2911, 1
    %2913 = vsyncpa [#allocation4], 1
    %s2914 = scalar_lea.sflag [#allocation4], 1
    %2915 = vsyncpa %s2914, 1

</llo_original>
